<compile_context>
chip_gen: v6e
topology: v6e:2x2x1
jax: 0.10.0
libtpu: 0.0.40
codegen_flags: <defaults>
</compile_context>

<pallas_src>
import functools
import math

import jax
import jax.numpy as jnp
from jax import lax
from jax.experimental import pallas as pl
from jax.experimental.pallas import tpu as pltpu

EPS = 1e-6


def _layer_norm(v, a, b, d):
    # Annotated-Transformer LayerNorm: unbiased std (ddof=1), eps added to std.
    mean = jnp.mean(v, axis=-1, keepdims=True)
    diff = v - mean
    var = jnp.sum(diff * diff, axis=-1, keepdims=True) * jnp.float32(1.0 / (d - 1))
    inv = pl.reciprocal(jnp.sqrt(var) + jnp.float32(EPS), approx=False)
    return a * diff * inv + b


# ---------------------------------------------------------------------------
# One pallas_call for the whole Encoder stack.
# Grid = (batch, layer); per grid step: LN -> fused QKV GEMM -> per-head
# masked softmax attention -> output projection + residual -> LN -> FFN +
# residual; final LayerNorm fused into the last layer step.
# ---------------------------------------------------------------------------
def _encoder_stack_kernel(x_ref, mask_ref, wqkv_ref, wo_ref, w1_ref, b1_ref,
                          w2_ref, pvec_ref, fln_ref, o_ref, x_sc, head_sc, *, H):
    l = pl.program_id(1)
    n_layers = pl.num_programs(1)

    # Load the fresh activation into the VMEM carry on the first layer step.
    @pl.when(l == 0)
    def _():
        x_sc[...] = x_ref[0].astype(jnp.float32)

    x = x_sc[...]                                    # [T, D] activation carry
    T, D = x.shape
    dk = D // H

    p = pvec_ref[0]                                  # [9, D] packed vectors
    ln0_a, ln0_b = p[0:1], p[1:2]
    bq, bk, bv, bo = p[2:3], p[3:4], p[4:5], p[5:6]
    ln1_a, ln1_b, b2 = p[6:7], p[7:8], p[8:9]

    # ---- Sublayer 0: x + W_o(MHA(LN(x), mask)) ----
    xn = _layer_norm(x, ln0_a, ln0_b, D)
    qkv = jnp.dot(xn, wqkv_ref[0], preferred_element_type=jnp.float32)   # [T, 3D]
    q = (qkv[:, 0:D] + bq) * jnp.float32(1.0 / math.sqrt(dk))            # scale folded into q
    k = qkv[:, D:2 * D] + bk
    v = qkv[:, 2 * D:3 * D] + bv

    mask = mask_ref[0]                               # [Mr, T], Mr in {1, T}
    neg = jnp.float32(-1e9)
    for h in range(H):                               # static unroll over heads
        sl = slice(h * dk, (h + 1) * dk)
        qh, kh, vh = q[:, sl], k[:, sl], v[:, sl]    # [T, dk]
        # Contract last dims of q and k directly (no kh.T relayout).
        s = lax.dot_general(qh, kh, (((1,), (1,)), ((), ())),
                            preferred_element_type=jnp.float32)          # [T, T]
        s = jnp.where(mask != 0, s, neg)             # masked_fill(mask == 0, -1e9)
        s = s - jnp.max(s, axis=-1, keepdims=True)
        pa = jnp.exp(s)
        pa = pa * pl.reciprocal(jnp.sum(pa, axis=-1, keepdims=True), approx=True)
        head_sc[:, sl] = jnp.dot(pa, vh, preferred_element_type=jnp.float32)

    x = x + jnp.dot(head_sc[...], wo_ref[0], preferred_element_type=jnp.float32) + bo

    # ---- Sublayer 1: x + W2(relu(W1(LN(x)) + b1)) + b2 ----
    xn2 = _layer_norm(x, ln1_a, ln1_b, D)
    h1 = jnp.dot(xn2, w1_ref[0], preferred_element_type=jnp.float32) + b1_ref[0]
    h1 = jnp.maximum(h1, 0.0)
    x = x + jnp.dot(h1, w2_ref[0], preferred_element_type=jnp.float32) + b2

    x_sc[...] = x                                    # carry to next layer step

    # ---- Final Encoder LayerNorm, fused into the last layer step ----
    @pl.when(l == n_layers - 1)
    def _():
        fln = fln_ref[...]                           # [2, D]
        o_ref[0] = _layer_norm(x, fln[0:1], fln[1:2], D).astype(o_ref.dtype)


def encoder_forward(params, x, mask):
    B, T, D = x.shape
    layers = params["layers"]
    N = len(layers)
    H = layers[0]["h"]
    Dff = layers[0]["ff_w1"].shape[1]

    # ---- Pack per-layer weights with a leading layer axis (grid-indexed) ----
    wqkv = jnp.stack([jnp.concatenate([lp["wq"], lp["wk"], lp["wv"]], axis=1)
                      for lp in layers])                              # [N, D, 3D]
    wo = jnp.stack([lp["wo"] for lp in layers])                       # [N, D, D]
    w1 = jnp.stack([lp["ff_w1"] for lp in layers])                    # [N, D, Dff]
    w2 = jnp.stack([lp["ff_w2"] for lp in layers])                    # [N, Dff, D]
    pvec = jnp.stack([jnp.stack([lp["ln0_a"], lp["ln0_b"],
                                 lp["bq"], lp["bk"], lp["bv"], lp["bo"],
                                 lp["ln1_a"], lp["ln1_b"], lp["ff_b2"]])
                      for lp in layers])                              # [N, 9, D]
    b1 = jnp.stack([lp["ff_b1"].reshape(1, Dff) for lp in layers])    # [N, 1, Dff]
    fln = jnp.stack([params["ln_a"], params["ln_b"]])                 # [2, D]

    # Padding mask broadcast/convert done ONCE for the whole stack.
    maskb = jnp.broadcast_to(mask, (B,) + mask.shape[1:]).astype(jnp.float32)
    Mr = maskb.shape[1]

    per_batch = pl.BlockSpec((1, T, D), lambda b, l: (b, 0, 0))

    def per_layer(shape):
        return pl.BlockSpec((1,) + shape, lambda b, l: (l, 0, 0))

    kernel = functools.partial(_encoder_stack_kernel, H=H)
    return pl.pallas_call(
        kernel,
        out_shape=jax.ShapeDtypeStruct((B, T, D), x.dtype),
        grid=(B, N),
        in_specs=[
            per_batch,                                            # x
            pl.BlockSpec((1, Mr, T), lambda b, l: (b, 0, 0)),     # mask
            per_layer((D, 3 * D)),                                # fused QKV weights
            per_layer((D, D)),                                    # W_o
            per_layer((D, Dff)),                                  # FFN W1
            per_layer((1, Dff)),                                  # FFN b1
            per_layer((Dff, D)),                                  # FFN W2
            per_layer((9, D)),                                    # packed LN gains/biases + proj biases
            pl.BlockSpec((2, D), lambda b, l: (0, 0)),            # final LN params
        ],
        out_specs=per_batch,
        scratch_shapes=[pltpu.VMEM((T, D), jnp.float32),          # activation carry across layers
                        pltpu.VMEM((T, D), jnp.float32)],         # per-head output buffer
        compiler_params=pltpu.CompilerParams(
            dimension_semantics=("parallel", "arbitrary")),
    )(x, maskb, wqkv, wo, w1, b1, w2, pvec, fln)


# ----------------------------- Parameter setup -----------------------------
def _init_layer(key, D, H, d_ff, scale=0.05):
    ks = jax.random.split(key, 6)

    def lin(k, din, dout):
        return (scale * jax.random.normal(k, (din, dout), jnp.float32),
                jnp.zeros((dout,), jnp.float32))

    wq, bq = lin(ks[0], D, D)
    wk, bk = lin(ks[1], D, D)
    wv, bv = lin(ks[2], D, D)
    wo, bo = lin(ks[3], D, D)
    w1, b1 = lin(ks[4], D, d_ff)
    w2, b2 = lin(ks[5], d_ff, D)
    return dict(h=H,
                wq=wq, bq=bq, wk=wk, bk=bk, wv=wv, bv=bv, wo=wo, bo=bo,
                ff_w1=w1, ff_b1=b1, ff_w2=w2, ff_b2=b2,
                ln0_a=jnp.ones((D,), jnp.float32), ln0_b=jnp.zeros((D,), jnp.float32),
                ln1_a=jnp.ones((D,), jnp.float32), ln1_b=jnp.zeros((D,), jnp.float32))


def init_params(key, D, H, d_ff, N):
    keys = jax.random.split(key, N)
    return dict(layers=[_init_layer(k, D, H, d_ff) for k in keys],
                ln_a=jnp.ones((D,), jnp.float32),
                ln_b=jnp.zeros((D,), jnp.float32))


if __name__ == "__main__":
    B, T, D, H, d_ff, N = 2, 8, 32, 4, 64, 2
    key = jax.random.PRNGKey(0)
    kx, kp = jax.random.split(key, 2)

    x = jax.random.normal(kx, (B, T, D), jnp.float32)
    params = init_params(kp, D, H, d_ff, N)

    # Encoder src mask: [B, 1, T] padding mask; mask out the last 2 tokens of
    # batch element 1 to exercise the masked_fill path.
    mask = jnp.ones((B, 1, T), jnp.float32).at[1, 0, 6:].set(0.0)

    out = encoder_forward(params, x, mask)
    jax.block_until_ready(out)
    assert out.shape == (B, T, D)
    print("KERNEL_OK")
</pallas_src>

<mosaic_0001>
module attributes {stable_mosaic.version = 11 : i64} {
  func.func @_encoder_stack_kernel(%arg0: i32, %arg1: i32, %arg2: memref<1x8x32xf32, #tpu.memory_space<vmem>>, %arg3: memref<1x1x8xf32, #tpu.memory_space<vmem>>, %arg4: memref<1x32x96xf32, #tpu.memory_space<vmem>>, %arg5: memref<1x32x32xf32, #tpu.memory_space<vmem>>, %arg6: memref<1x32x64xf32, #tpu.memory_space<vmem>>, %arg7: memref<1x1x64xf32, #tpu.memory_space<vmem>>, %arg8: memref<1x64x32xf32, #tpu.memory_space<vmem>>, %arg9: memref<1x9x32xf32, #tpu.memory_space<vmem>>, %arg10: memref<2x32xf32, #tpu.memory_space<vmem>>, %arg11: memref<1x8x32xf32, #tpu.memory_space<vmem>>, %arg12: memref<8x32xf32, #tpu.memory_space<vmem>>, %arg13: memref<8x32xf32, #tpu.memory_space<vmem>>) attributes {dimension_semantics = [#tpu.dimension_semantics<parallel>, #tpu.dimension_semantics<arbitrary>], iteration_bounds = array<i64: 2, 2>, scalar_prefetch = 0 : i64, scratch_operands = 2 : i64, tpu.core_type = #tpu.core_type<tc>, window_params = [{transform_indices = @transform_0, window_bounds = array<i64: 1, 8, 32>}, {transform_indices = @transform_1, window_bounds = array<i64: 1, 1, 8>}, {transform_indices = @transform_2, window_bounds = array<i64: 1, 32, 96>}, {transform_indices = @transform_3, window_bounds = array<i64: 1, 32, 32>}, {transform_indices = @transform_4, window_bounds = array<i64: 1, 32, 64>}, {transform_indices = @transform_5, window_bounds = array<i64: 1, 1, 64>}, {transform_indices = @transform_6, window_bounds = array<i64: 1, 64, 32>}, {transform_indices = @transform_7, window_bounds = array<i64: 1, 9, 32>}, {pipeline_mode = #tpu.pipeline_mode<synchronous>, transform_indices = @transform_8, window_bounds = array<i64: 2, 32>}, {transform_indices = @transform_9, window_bounds = array<i64: 1, 8, 32>}]} {
    %c0_i32 = arith.constant 0 : i32
    %0 = arith.cmpi eq, %arg1, %c0_i32 : i32
    %1 = arith.extui %0 : i1 to i32
    %c0_i32_0 = arith.constant 0 : i32
    %2 = arith.cmpi ne, %1, %c0_i32_0 : i32
    scf.if %2 {
      %c0_72 = arith.constant 0 : index
      %c0_73 = arith.constant 0 : index
      %c0_74 = arith.constant 0 : index
      %187 = vector.load %arg2[%c0_72, %c0_73, %c0_74] : memref<1x8x32xf32, #tpu.memory_space<vmem>>, vector<1x8x32xf32>
      %188 = vector.shape_cast %187 : vector<1x8x32xf32> to vector<8x32xf32>
      %c0_75 = arith.constant 0 : index
      %c0_76 = arith.constant 0 : index
      %189 = vector.load %arg12[%c0_75, %c0_76] : memref<8x32xf32, #tpu.memory_space<vmem>>, vector<8x32xf32>
      tpu.vector_store %arg12[%c0_75, %c0_76], %188 {strides = array<i32>} : memref<8x32xf32, #tpu.memory_space<vmem>>, vector<8x32xf32>,
    } else {
    }
    %c0 = arith.constant 0 : index
    %c0_1 = arith.constant 0 : index
    %3 = vector.load %arg12[%c0, %c0_1] : memref<8x32xf32, #tpu.memory_space<vmem>>, vector<8x32xf32>
    %c0_2 = arith.constant 0 : index
    %c0_3 = arith.constant 0 : index
    %c0_4 = arith.constant 0 : index
    %4 = vector.load %arg9[%c0_2, %c0_3, %c0_4] : memref<1x9x32xf32, #tpu.memory_space<vmem>>, vector<1x9x32xf32>
    %5 = vector.shape_cast %4 : vector<1x9x32xf32> to vector<9x32xf32>
    %6 = vector.extract_strided_slice %5 {offsets = [0, 0], sizes = [1, 32], strides = [1, 1]} : vector<9x32xf32> to vector<1x32xf32>
    %7 = vector.extract_strided_slice %5 {offsets = [1, 0], sizes = [1, 32], strides = [1, 1]} : vector<9x32xf32> to vector<1x32xf32>
    %8 = vector.extract_strided_slice %5 {offsets = [2, 0], sizes = [1, 32], strides = [1, 1]} : vector<9x32xf32> to vector<1x32xf32>
    %9 = vector.extract_strided_slice %5 {offsets = [3, 0], sizes = [1, 32], strides = [1, 1]} : vector<9x32xf32> to vector<1x32xf32>
    %10 = vector.extract_strided_slice %5 {offsets = [4, 0], sizes = [1, 32], strides = [1, 1]} : vector<9x32xf32> to vector<1x32xf32>
    %11 = vector.extract_strided_slice %5 {offsets = [5, 0], sizes = [1, 32], strides = [1, 1]} : vector<9x32xf32> to vector<1x32xf32>
    %12 = vector.extract_strided_slice %5 {offsets = [6, 0], sizes = [1, 32], strides = [1, 1]} : vector<9x32xf32> to vector<1x32xf32>
    %13 = vector.extract_strided_slice %5 {offsets = [7, 0], sizes = [1, 32], strides = [1, 1]} : vector<9x32xf32> to vector<1x32xf32>
    %14 = vector.extract_strided_slice %5 {offsets = [8, 0], sizes = [1, 32], strides = [1, 1]} : vector<9x32xf32> to vector<1x32xf32>
    %cst = arith.constant dense<0.000000e+00> : vector<8xf32>
    %15 = vector.multi_reduction <add>, %3, %cst [1] : vector<8x32xf32> to vector<8xf32>
    %16 = vector.shape_cast %15 : vector<8xf32> to vector<8x1xf32>
    %cst_5 = arith.constant 3.200000e+01 : f32
    %17 = vector.broadcast %cst_5 : f32 to vector<8x1xf32>
    %18 = arith.divf %16, %17 : vector<8x1xf32>
    %19 = vector.broadcast %18 : vector<8x1xf32> to vector<8x32xf32>
    %20 = arith.subf %3, %19 : vector<8x32xf32>
    %21 = arith.mulf %20, %20 : vector<8x32xf32>
    %cst_6 = arith.constant dense<0.000000e+00> : vector<8xf32>
    %22 = vector.multi_reduction <add>, %21, %cst_6 [1] : vector<8x32xf32> to vector<8xf32>
    %23 = vector.shape_cast %22 : vector<8xf32> to vector<8x1xf32>
    %cst_7 = arith.constant 0.0322580636 : f32
    %24 = vector.broadcast %cst_7 : f32 to vector<8x1xf32>
    %25 = arith.mulf %23, %24 : vector<8x1xf32>
    %26 = math.sqrt %25 : vector<8x1xf32>
    %cst_8 = arith.constant 9.99999997E-7 : f32
    %27 = vector.broadcast %cst_8 : f32 to vector<8x1xf32>
    %28 = arith.addf %26, %27 : vector<8x1xf32>
    %29 = tpu.reciprocal %28 : vector<8x1xf32> -> vector<8x1xf32>
    %30 = vector.broadcast %6 : vector<1x32xf32> to vector<8x32xf32>
    %31 = arith.mulf %30, %20 : vector<8x32xf32>
    %32 = vector.broadcast %29 : vector<8x1xf32> to vector<8x32xf32>
    %33 = arith.mulf %31, %32 : vector<8x32xf32>
    %34 = vector.broadcast %7 : vector<1x32xf32> to vector<8x32xf32>
    %35 = arith.addf %33, %34 : vector<8x32xf32>
    %c0_9 = arith.constant 0 : index
    %c0_10 = arith.constant 0 : index
    %c0_11 = arith.constant 0 : index
    %36 = vector.load %arg4[%c0_9, %c0_10, %c0_11] : memref<1x32x96xf32, #tpu.memory_space<vmem>>, vector<1x32x96xf32>
    %37 = vector.shape_cast %36 : vector<1x32x96xf32> to vector<32x96xf32>
    %cst_12 = arith.constant dense<0.000000e+00> : vector<8x96xf32>
    %38 = tpu.matmul %35, %37, %cst_12 {dimension_numbers = #tpu.dot_dimension_numbers<[1], [0], [0], [1], [0, 0, 1, 1], [], []>} : vector<8x32xf32>, vector<32x96xf32>, vector<8x96xf32> -> vector<8x96xf32>
    %39 = vector.extract_strided_slice %38 {offsets = [0, 0], sizes = [8, 32], strides = [1, 1]} : vector<8x96xf32> to vector<8x32xf32>
    %40 = vector.broadcast %8 : vector<1x32xf32> to vector<8x32xf32>
    %41 = arith.addf %39, %40 : vector<8x32xf32>
    %cst_13 = arith.constant 0.353553385 : f32
    %42 = vector.broadcast %cst_13 : f32 to vector<8x32xf32>
    %43 = arith.mulf %41, %42 : vector<8x32xf32>
    %44 = vector.extract_strided_slice %38 {offsets = [0, 32], sizes = [8, 32], strides = [1, 1]} : vector<8x96xf32> to vector<8x32xf32>
    %45 = vector.broadcast %9 : vector<1x32xf32> to vector<8x32xf32>
    %46 = arith.addf %44, %45 : vector<8x32xf32>
    %47 = vector.extract_strided_slice %38 {offsets = [0, 64], sizes = [8, 32], strides = [1, 1]} : vector<8x96xf32> to vector<8x32xf32>
    %48 = vector.broadcast %10 : vector<1x32xf32> to vector<8x32xf32>
    %49 = arith.addf %47, %48 : vector<8x32xf32>
    %c0_14 = arith.constant 0 : index
    %c0_15 = arith.constant 0 : index
    %c0_16 = arith.constant 0 : index
    %50 = vector.load %arg3[%c0_14, %c0_15, %c0_16] : memref<1x1x8xf32, #tpu.memory_space<vmem>>, vector<1x1x8xf32>
    %51 = vector.shape_cast %50 : vector<1x1x8xf32> to vector<1x8xf32>
    %52 = vector.extract_strided_slice %43 {offsets = [0, 0], sizes = [8, 8], strides = [1, 1]} : vector<8x32xf32> to vector<8x8xf32>
    %53 = vector.extract_strided_slice %46 {offsets = [0, 0], sizes = [8, 8], strides = [1, 1]} : vector<8x32xf32> to vector<8x8xf32>
    %54 = vector.extract_strided_slice %49 {offsets = [0, 0], sizes = [8, 8], strides = [1, 1]} : vector<8x32xf32> to vector<8x8xf32>
    %cst_17 = arith.constant dense<0.000000e+00> : vector<8x8xf32>
    %55 = tpu.matmul %52, %53, %cst_17 {dimension_numbers = #tpu.dot_dimension_numbers<[1], [1], [0], [0], [0, 0, 1, 0], [], []>} : vector<8x8xf32>, vector<8x8xf32>, vector<8x8xf32> -> vector<8x8xf32>
    %cst_18 = arith.constant 0.000000e+00 : f32
    %56 = vector.broadcast %cst_18 : f32 to vector<1x8xf32>
    %57 = arith.cmpf one, %51, %56 : vector<1x8xf32>
    %cst_19 = arith.constant -1.000000e+09 : f32
    %58 = vector.shape_cast %57 : vector<1x8xi1> to vector<1x8xi1>
    %59 = vector.broadcast %58 : vector<1x8xi1> to vector<8x8xi1>
    %60 = vector.broadcast %cst_19 : f32 to vector<8x8xf32>
    %61 = arith.select %59, %55, %60 : vector<8x8xi1>, vector<8x8xf32>
    %cst_20 = arith.constant dense<0xFF800000> : vector<8xf32>
    %62 = vector.multi_reduction <maximumf>, %61, %cst_20 [1] : vector<8x8xf32> to vector<8xf32>
    %63 = vector.shape_cast %62 : vector<8xf32> to vector<8x1xf32>
    %64 = vector.broadcast %63 : vector<8x1xf32> to vector<8x8xf32>
    %65 = arith.subf %61, %64 : vector<8x8xf32>
    %66 = math.exp %65 : vector<8x8xf32>
    %cst_21 = arith.constant dense<0.000000e+00> : vector<8xf32>
    %67 = vector.multi_reduction <add>, %66, %cst_21 [1] : vector<8x8xf32> to vector<8xf32>
    %68 = vector.shape_cast %67 : vector<8xf32> to vector<8x1xf32>
    %69 = tpu.reciprocal %68 {approx = true} : vector<8x1xf32> -> vector<8x1xf32>
    %70 = vector.broadcast %69 : vector<8x1xf32> to vector<8x8xf32>
    %71 = arith.mulf %66, %70 : vector<8x8xf32>
    %cst_22 = arith.constant dense<0.000000e+00> : vector<8x8xf32>
    %72 = tpu.matmul %71, %54, %cst_22 {dimension_numbers = #tpu.dot_dimension_numbers<[1], [0], [0], [1], [0, 0, 1, 1], [], []>} : vector<8x8xf32>, vector<8x8xf32>, vector<8x8xf32> -> vector<8x8xf32>
    %c0_23 = arith.constant 0 : index
    %c0_24 = arith.constant 0 : index
    %73 = vector.load %arg13[%c0_23, %c0_24] : memref<8x32xf32, #tpu.memory_space<vmem>>, vector<8x8xf32>
    tpu.vector_store %arg13[%c0_23, %c0_24], %72 {strides = array<i32>} : memref<8x32xf32, #tpu.memory_space<vmem>>, vector<8x8xf32>,
    %74 = vector.extract_strided_slice %43 {offsets = [0, 8], sizes = [8, 8], strides = [1, 1]} : vector<8x32xf32> to vector<8x8xf32>
    %75 = vector.extract_strided_slice %46 {offsets = [0, 8], sizes = [8, 8], strides = [1, 1]} : vector<8x32xf32> to vector<8x8xf32>
    %76 = vector.extract_strided_slice %49 {offsets = [0, 8], sizes = [8, 8], strides = [1, 1]} : vector<8x32xf32> to vector<8x8xf32>
    %cst_25 = arith.constant dense<0.000000e+00> : vector<8x8xf32>
    %77 = tpu.matmul %74, %75, %cst_25 {dimension_numbers = #tpu.dot_dimension_numbers<[1], [1], [0], [0], [0, 0, 1, 0], [], []>} : vector<8x8xf32>, vector<8x8xf32>, vector<8x8xf32> -> vector<8x8xf32>
    %cst_26 = arith.constant 0.000000e+00 : f32
    %78 = vector.broadcast %cst_26 : f32 to vector<1x8xf32>
    %79 = arith.cmpf one, %51, %78 : vector<1x8xf32>
    %cst_27 = arith.constant -1.000000e+09 : f32
    %80 = vector.shape_cast %79 : vector<1x8xi1> to vector<1x8xi1>
    %81 = vector.broadcast %80 : vector<1x8xi1> to vector<8x8xi1>
    %82 = vector.broadcast %cst_27 : f32 to vector<8x8xf32>
    %83 = arith.select %81, %77, %82 : vector<8x8xi1>, vector<8x8xf32>
    %cst_28 = arith.constant dense<0xFF800000> : vector<8xf32>
    %84 = vector.multi_reduction <maximumf>, %83, %cst_28 [1] : vector<8x8xf32> to vector<8xf32>
    %85 = vector.shape_cast %84 : vector<8xf32> to vector<8x1xf32>
    %86 = vector.broadcast %85 : vector<8x1xf32> to vector<8x8xf32>
    %87 = arith.subf %83, %86 : vector<8x8xf32>
    %88 = math.exp %87 : vector<8x8xf32>
    %cst_29 = arith.constant dense<0.000000e+00> : vector<8xf32>
    %89 = vector.multi_reduction <add>, %88, %cst_29 [1] : vector<8x8xf32> to vector<8xf32>
    %90 = vector.shape_cast %89 : vector<8xf32> to vector<8x1xf32>
    %91 = tpu.reciprocal %90 {approx = true} : vector<8x1xf32> -> vector<8x1xf32>
    %92 = vector.broadcast %91 : vector<8x1xf32> to vector<8x8xf32>
    %93 = arith.mulf %88, %92 : vector<8x8xf32>
    %cst_30 = arith.constant dense<0.000000e+00> : vector<8x8xf32>
    %94 = tpu.matmul %93, %76, %cst_30 {dimension_numbers = #tpu.dot_dimension_numbers<[1], [0], [0], [1], [0, 0, 1, 1], [], []>} : vector<8x8xf32>, vector<8x8xf32>, vector<8x8xf32> -> vector<8x8xf32>
    %c0_31 = arith.constant 0 : index
    %c8 = arith.constant 8 : index
    %95 = vector.load %arg13[%c0_31, %c8] : memref<8x32xf32, #tpu.memory_space<vmem>>, vector<8x8xf32>
    tpu.vector_store %arg13[%c0_31, %c8], %94 {strides = array<i32>} : memref<8x32xf32, #tpu.memory_space<vmem>>, vector<8x8xf32>,
    %96 = vector.extract_strided_slice %43 {offsets = [0, 16], sizes = [8, 8], strides = [1, 1]} : vector<8x32xf32> to vector<8x8xf32>
    %97 = vector.extract_strided_slice %46 {offsets = [0, 16], sizes = [8, 8], strides = [1, 1]} : vector<8x32xf32> to vector<8x8xf32>
    %98 = vector.extract_strided_slice %49 {offsets = [0, 16], sizes = [8, 8], strides = [1, 1]} : vector<8x32xf32> to vector<8x8xf32>
    %cst_32 = arith.constant dense<0.000000e+00> : vector<8x8xf32>
    %99 = tpu.matmul %96, %97, %cst_32 {dimension_numbers = #tpu.dot_dimension_numbers<[1], [1], [0], [0], [0, 0, 1, 0], [], []>} : vector<8x8xf32>, vector<8x8xf32>, vector<8x8xf32> -> vector<8x8xf32>
    %cst_33 = arith.constant 0.000000e+00 : f32
    %100 = vector.broadcast %cst_33 : f32 to vector<1x8xf32>
    %101 = arith.cmpf one, %51, %100 : vector<1x8xf32>
    %cst_34 = arith.constant -1.000000e+09 : f32
    %102 = vector.shape_cast %101 : vector<1x8xi1> to vector<1x8xi1>
    %103 = vector.broadcast %102 : vector<1x8xi1> to vector<8x8xi1>
    %104 = vector.broadcast %cst_34 : f32 to vector<8x8xf32>
    %105 = arith.select %103, %99, %104 : vector<8x8xi1>, vector<8x8xf32>
    %cst_35 = arith.constant dense<0xFF800000> : vector<8xf32>
    %106 = vector.multi_reduction <maximumf>, %105, %cst_35 [1] : vector<8x8xf32> to vector<8xf32>
    %107 = vector.shape_cast %106 : vector<8xf32> to vector<8x1xf32>
    %108 = vector.broadcast %107 : vector<8x1xf32> to vector<8x8xf32>
    %109 = arith.subf %105, %108 : vector<8x8xf32>
    %110 = math.exp %109 : vector<8x8xf32>
    %cst_36 = arith.constant dense<0.000000e+00> : vector<8xf32>
    %111 = vector.multi_reduction <add>, %110, %cst_36 [1] : vector<8x8xf32> to vector<8xf32>
    %112 = vector.shape_cast %111 : vector<8xf32> to vector<8x1xf32>
    %113 = tpu.reciprocal %112 {approx = true} : vector<8x1xf32> -> vector<8x1xf32>
    %114 = vector.broadcast %113 : vector<8x1xf32> to vector<8x8xf32>
    %115 = arith.mulf %110, %114 : vector<8x8xf32>
    %cst_37 = arith.constant dense<0.000000e+00> : vector<8x8xf32>
    %116 = tpu.matmul %115, %98, %cst_37 {dimension_numbers = #tpu.dot_dimension_numbers<[1], [0], [0], [1], [0, 0, 1, 1], [], []>} : vector<8x8xf32>, vector<8x8xf32>, vector<8x8xf32> -> vector<8x8xf32>
    %c0_38 = arith.constant 0 : index
    %c16 = arith.constant 16 : index
    %117 = vector.load %arg13[%c0_38, %c16] : memref<8x32xf32, #tpu.memory_space<vmem>>, vector<8x8xf32>
    tpu.vector_store %arg13[%c0_38, %c16], %116 {strides = array<i32>} : memref<8x32xf32, #tpu.memory_space<vmem>>, vector<8x8xf32>,
    %118 = vector.extract_strided_slice %43 {offsets = [0, 24], sizes = [8, 8], strides = [1, 1]} : vector<8x32xf32> to vector<8x8xf32>
    %119 = vector.extract_strided_slice %46 {offsets = [0, 24], sizes = [8, 8], strides = [1, 1]} : vector<8x32xf32> to vector<8x8xf32>
    %120 = vector.extract_strided_slice %49 {offsets = [0, 24], sizes = [8, 8], strides = [1, 1]} : vector<8x32xf32> to vector<8x8xf32>
    %cst_39 = arith.constant dense<0.000000e+00> : vector<8x8xf32>
    %121 = tpu.matmul %118, %119, %cst_39 {dimension_numbers = #tpu.dot_dimension_numbers<[1], [1], [0], [0], [0, 0, 1, 0], [], []>} : vector<8x8xf32>, vector<8x8xf32>, vector<8x8xf32> -> vector<8x8xf32>
    %cst_40 = arith.constant 0.000000e+00 : f32
    %122 = vector.broadcast %cst_40 : f32 to vector<1x8xf32>
    %123 = arith.cmpf one, %51, %122 : vector<1x8xf32>
    %cst_41 = arith.constant -1.000000e+09 : f32
    %124 = vector.shape_cast %123 : vector<1x8xi1> to vector<1x8xi1>
    %125 = vector.broadcast %124 : vector<1x8xi1> to vector<8x8xi1>
    %126 = vector.broadcast %cst_41 : f32 to vector<8x8xf32>
    %127 = arith.select %125, %121, %126 : vector<8x8xi1>, vector<8x8xf32>
    %cst_42 = arith.constant dense<0xFF800000> : vector<8xf32>
    %128 = vector.multi_reduction <maximumf>, %127, %cst_42 [1] : vector<8x8xf32> to vector<8xf32>
    %129 = vector.shape_cast %128 : vector<8xf32> to vector<8x1xf32>
    %130 = vector.broadcast %129 : vector<8x1xf32> to vector<8x8xf32>
    %131 = arith.subf %127, %130 : vector<8x8xf32>
    %132 = math.exp %131 : vector<8x8xf32>
    %cst_43 = arith.constant dense<0.000000e+00> : vector<8xf32>
    %133 = vector.multi_reduction <add>, %132, %cst_43 [1] : vector<8x8xf32> to vector<8xf32>
    %134 = vector.shape_cast %133 : vector<8xf32> to vector<8x1xf32>
    %135 = tpu.reciprocal %134 {approx = true} : vector<8x1xf32> -> vector<8x1xf32>
    %136 = vector.broadcast %135 : vector<8x1xf32> to vector<8x8xf32>
    %137 = arith.mulf %132, %136 : vector<8x8xf32>
    %cst_44 = arith.constant dense<0.000000e+00> : vector<8x8xf32>
    %138 = tpu.matmul %137, %120, %cst_44 {dimension_numbers = #tpu.dot_dimension_numbers<[1], [0], [0], [1], [0, 0, 1, 1], [], []>} : vector<8x8xf32>, vector<8x8xf32>, vector<8x8xf32> -> vector<8x8xf32>
    %c0_45 = arith.constant 0 : index
    %c24 = arith.constant 24 : index
    %139 = vector.load %arg13[%c0_45, %c24] : memref<8x32xf32, #tpu.memory_space<vmem>>, vector<8x8xf32>
    tpu.vector_store %arg13[%c0_45, %c24], %138 {strides = array<i32>} : memref<8x32xf32, #tpu.memory_space<vmem>>, vector<8x8xf32>,
    %c0_46 = arith.constant 0 : index
    %c0_47 = arith.constant 0 : index
    %140 = vector.load %arg13[%c0_46, %c0_47] : memref<8x32xf32, #tpu.memory_space<vmem>>, vector<8x32xf32>
    %c0_48 = arith.constant 0 : index
    %c0_49 = arith.constant 0 : index
    %c0_50 = arith.constant 0 : index
    %141 = vector.load %arg5[%c0_48, %c0_49, %c0_50] : memref<1x32x32xf32, #tpu.memory_space<vmem>>, vector<1x32x32xf32>
    %142 = vector.shape_cast %141 : vector<1x32x32xf32> to vector<32x32xf32>
    %cst_51 = arith.constant dense<0.000000e+00> : vector<8x32xf32>
    %143 = tpu.matmul %140, %142, %cst_51 {dimension_numbers = #tpu.dot_dimension_numbers<[1], [0], [0], [1], [0, 0, 1, 1], [], []>} : vector<8x32xf32>, vector<32x32xf32>, vector<8x32xf32> -> vector<8x32xf32>
    %144 = arith.addf %3, %143 : vector<8x32xf32>
    %145 = vector.broadcast %11 : vector<1x32xf32> to vector<8x32xf32>
    %146 = arith.addf %144, %145 : vector<8x32xf32>
    %cst_52 = arith.constant dense<0.000000e+00> : vector<8xf32>
    %147 = vector.multi_reduction <add>, %146, %cst_52 [1] : vector<8x32xf32> to vector<8xf32>
    %148 = vector.shape_cast %147 : vector<8xf32> to vector<8x1xf32>
    %cst_53 = arith.constant 3.200000e+01 : f32
    %149 = vector.broadcast %cst_53 : f32 to vector<8x1xf32>
    %150 = arith.divf %148, %149 : vector<8x1xf32>
    %151 = vector.broadcast %150 : vector<8x1xf32> to vector<8x32xf32>
    %152 = arith.subf %146, %151 : vector<8x32xf32>
    %153 = arith.mulf %152, %152 : vector<8x32xf32>
    %cst_54 = arith.constant dense<0.000000e+00> : vector<8xf32>
    %154 = vector.multi_reduction <add>, %153, %cst_54 [1] : vector<8x32xf32> to vector<8xf32>
    %155 = vector.shape_cast %154 : vector<8xf32> to vector<8x1xf32>
    %cst_55 = arith.constant 0.0322580636 : f32
    %156 = vector.broadcast %cst_55 : f32 to vector<8x1xf32>
    %157 = arith.mulf %155, %156 : vector<8x1xf32>
    %158 = math.sqrt %157 : vector<8x1xf32>
    %cst_56 = arith.constant 9.99999997E-7 : f32
    %159 = vector.broadcast %cst_56 : f32 to vector<8x1xf32>
    %160 = arith.addf %158, %159 : vector<8x1xf32>
    %161 = tpu.reciprocal %160 : vector<8x1xf32> -> vector<8x1xf32>
    %162 = vector.broadcast %12 : vector<1x32xf32> to vector<8x32xf32>
    %163 = arith.mulf %162, %152 : vector<8x32xf32>
    %164 = vector.broadcast %161 : vector<8x1xf32> to vector<8x32xf32>
    %165 = arith.mulf %163, %164 : vector<8x32xf32>
    %166 = vector.broadcast %13 : vector<1x32xf32> to vector<8x32xf32>
    %167 = arith.addf %165, %166 : vector<8x32xf32>
    %c0_57 = arith.constant 0 : index
    %c0_58 = arith.constant 0 : index
    %c0_59 = arith.constant 0 : index
    %168 = vector.load %arg6[%c0_57, %c0_58, %c0_59] : memref<1x32x64xf32, #tpu.memory_space<vmem>>, vector<1x32x64xf32>
    %169 = vector.shape_cast %168 : vector<1x32x64xf32> to vector<32x64xf32>
    %cst_60 = arith.constant dense<0.000000e+00> : vector<8x64xf32>
    %170 = tpu.matmul %167, %169, %cst_60 {dimension_numbers = #tpu.dot_dimension_numbers<[1], [0], [0], [1], [0, 0, 1, 1], [], []>} : vector<8x32xf32>, vector<32x64xf32>, vector<8x64xf32> -> vector<8x64xf32>
    %c0_61 = arith.constant 0 : index
    %c0_62 = arith.constant 0 : index
    %c0_63 = arith.constant 0 : index
    %171 = vector.load %arg7[%c0_61, %c0_62, %c0_63] : memref<1x1x64xf32, #tpu.memory_space<vmem>>, vector<1x1x64xf32>
    %172 = vector.shape_cast %171 : vector<1x1x64xf32> to vector<1x64xf32>
    %173 = vector.broadcast %172 : vector<1x64xf32> to vector<8x64xf32>
    %174 = arith.addf %170, %173 : vector<8x64xf32>
    %cst_64 = arith.constant 0.000000e+00 : f32
    %175 = vector.broadcast %cst_64 : f32 to vector<8x64xf32>
    %176 = arith.maximumf %174, %175 : vector<8x64xf32>
    %c0_65 = arith.constant 0 : index
    %c0_66 = arith.constant 0 : index
    %c0_67 = arith.constant 0 : index
    %177 = vector.load %arg8[%c0_65, %c0_66, %c0_67] : memref<1x64x32xf32, #tpu.memory_space<vmem>>, vector<1x64x32xf32>
    %178 = vector.shape_cast %177 : vector<1x64x32xf32> to vector<64x32xf32>
    %cst_68 = arith.constant dense<0.000000e+00> : vector<8x32xf32>
    %179 = tpu.matmul %176, %178, %cst_68 {dimension_numbers = #tpu.dot_dimension_numbers<[1], [0], [0], [1], [0, 0, 1, 1], [], []>} : vector<8x64xf32>, vector<64x32xf32>, vector<8x32xf32> -> vector<8x32xf32>
    %180 = arith.addf %146, %179 : vector<8x32xf32>
    %181 = vector.broadcast %14 : vector<1x32xf32> to vector<8x32xf32>
    %182 = arith.addf %180, %181 : vector<8x32xf32>
    %c0_69 = arith.constant 0 : index
    %c0_70 = arith.constant 0 : index
    %183 = vector.load %arg12[%c0_69, %c0_70] : memref<8x32xf32, #tpu.memory_space<vmem>>, vector<8x32xf32>
    tpu.vector_store %arg12[%c0_69, %c0_70], %182 {strides = array<i32>} : memref<8x32xf32, #tpu.memory_space<vmem>>, vector<8x32xf32>,
    %c1_i32 = arith.constant 1 : i32
    %184 = arith.cmpi eq, %arg1, %c1_i32 : i32
    %185 = arith.extui %184 : i1 to i32
    %c0_i32_71 = arith.constant 0 : i32
    %186 = arith.cmpi ne, %185, %c0_i32_71 : i32
    scf.if %186 {
      %c0_72 = arith.constant 0 : index
      %c0_73 = arith.constant 0 : index
      %187 = vector.load %arg10[%c0_72, %c0_73] : memref<2x32xf32, #tpu.memory_space<vmem>>, vector<2x32xf32>
      %188 = vector.extract_strided_slice %187 {offsets = [0, 0], sizes = [1, 32], strides = [1, 1]} : vector<2x32xf32> to vector<1x32xf32>
      %189 = vector.extract_strided_slice %187 {offsets = [1, 0], sizes = [1, 32], strides = [1, 1]} : vector<2x32xf32> to vector<1x32xf32>
      %cst_74 = arith.constant dense<0.000000e+00> : vector<8xf32>
      %190 = vector.multi_reduction <add>, %182, %cst_74 [1] : vector<8x32xf32> to vector<8xf32>
      %191 = vector.shape_cast %190 : vector<8xf32> to vector<8x1xf32>
      %cst_75 = arith.constant 3.200000e+01 : f32
      %192 = vector.broadcast %cst_75 : f32 to vector<8x1xf32>
      %193 = arith.divf %191, %192 : vector<8x1xf32>
      %194 = vector.broadcast %193 : vector<8x1xf32> to vector<8x32xf32>
      %195 = arith.subf %182, %194 : vector<8x32xf32>
      %196 = arith.mulf %195, %195 : vector<8x32xf32>
      %cst_76 = arith.constant dense<0.000000e+00> : vector<8xf32>
      %197 = vector.multi_reduction <add>, %196, %cst_76 [1] : vector<8x32xf32> to vector<8xf32>
      %198 = vector.shape_cast %197 : vector<8xf32> to vector<8x1xf32>
      %cst_77 = arith.constant 0.0322580636 : f32
      %199 = vector.broadcast %cst_77 : f32 to vector<8x1xf32>
      %200 = arith.mulf %198, %199 : vector<8x1xf32>
      %201 = math.sqrt %200 : vector<8x1xf32>
      %cst_78 = arith.constant 9.99999997E-7 : f32
      %202 = vector.broadcast %cst_78 : f32 to vector<8x1xf32>
      %203 = arith.addf %201, %202 : vector<8x1xf32>
      %204 = tpu.reciprocal %203 : vector<8x1xf32> -> vector<8x1xf32>
      %205 = vector.broadcast %188 : vector<1x32xf32> to vector<8x32xf32>
      %206 = arith.mulf %205, %195 : vector<8x32xf32>
      %207 = vector.broadcast %204 : vector<8x1xf32> to vector<8x32xf32>
      %208 = arith.mulf %206, %207 : vector<8x32xf32>
      %209 = vector.broadcast %189 : vector<1x32xf32> to vector<8x32xf32>
      %210 = arith.addf %208, %209 : vector<8x32xf32>
      %c0_79 = arith.constant 0 : index
      %c0_80 = arith.constant 0 : index
      %c0_81 = arith.constant 0 : index
      %211 = vector.load %arg11[%c0_79, %c0_80, %c0_81] : memref<1x8x32xf32, #tpu.memory_space<vmem>>, vector<1x8x32xf32>
      %212 = vector.shape_cast %211 : vector<1x8x32xf32> to vector<8x32xf32>
      %213 = vector.shape_cast %210 : vector<8x32xf32> to vector<1x8x32xf32>
      tpu.vector_store %arg11[%c0_79, %c0_80, %c0_81], %213 {strides = array<i32>} : memref<1x8x32xf32, #tpu.memory_space<vmem>>, vector<1x8x32xf32>,
    } else {
    }
    return
  }
  func.func @transform_0(%arg0: i32, %arg1: i32) -> (i32, i32, i32) {
    %c0_i32 = arith.constant 0 : i32
    %c0_i32_0 = arith.constant 0 : i32
    %c0_i32_1 = arith.constant 0 : i32
    return %arg0, %c0_i32, %c0_i32_0 : i32, i32, i32
  }
  func.func @transform_1(%arg0: i32, %arg1: i32) -> (i32, i32, i32) {
    %c0_i32 = arith.constant 0 : i32
    %c0_i32_0 = arith.constant 0 : i32
    %c0_i32_1 = arith.constant 0 : i32
    return %arg0, %c0_i32, %c0_i32_0 : i32, i32, i32
  }
  func.func @transform_2(%arg0: i32, %arg1: i32) -> (i32, i32, i32) {
    %c0_i32 = arith.constant 0 : i32
    %c0_i32_0 = arith.constant 0 : i32
    %c0_i32_1 = arith.constant 0 : i32
    return %arg1, %c0_i32, %c0_i32_0 : i32, i32, i32
  }
  func.func @transform_3(%arg0: i32, %arg1: i32) -> (i32, i32, i32) {
    %c0_i32 = arith.constant 0 : i32
    %c0_i32_0 = arith.constant 0 : i32
    %c0_i32_1 = arith.constant 0 : i32
    return %arg1, %c0_i32, %c0_i32_0 : i32, i32, i32
  }
  func.func @transform_4(%arg0: i32, %arg1: i32) -> (i32, i32, i32) {
    %c0_i32 = arith.constant 0 : i32
    %c0_i32_0 = arith.constant 0 : i32
    %c0_i32_1 = arith.constant 0 : i32
    return %arg1, %c0_i32, %c0_i32_0 : i32, i32, i32
  }
  func.func @transform_5(%arg0: i32, %arg1: i32) -> (i32, i32, i32) {
    %c0_i32 = arith.constant 0 : i32
    %c0_i32_0 = arith.constant 0 : i32
    %c0_i32_1 = arith.constant 0 : i32
    return %arg1, %c0_i32, %c0_i32_0 : i32, i32, i32
  }
  func.func @transform_6(%arg0: i32, %arg1: i32) -> (i32, i32, i32) {
    %c0_i32 = arith.constant 0 : i32
    %c0_i32_0 = arith.constant 0 : i32
    %c0_i32_1 = arith.constant 0 : i32
    return %arg1, %c0_i32, %c0_i32_0 : i32, i32, i32
  }
  func.func @transform_7(%arg0: i32, %arg1: i32) -> (i32, i32, i32) {
    %c0_i32 = arith.constant 0 : i32
    %c0_i32_0 = arith.constant 0 : i32
    %c0_i32_1 = arith.constant 0 : i32
    return %arg1, %c0_i32, %c0_i32_0 : i32, i32, i32
  }
  func.func @transform_8(%arg0: i32, %arg1: i32) -> (i32, i32) {
    %c0_i32 = arith.constant 0 : i32
    %c0_i32_0 = arith.constant 0 : i32
    %c0_i32_1 = arith.constant 0 : i32
    return %c0_i32, %c0_i32_0 : i32, i32
  }
  func.func @transform_9(%arg0: i32, %arg1: i32) -> (i32, i32, i32) {
    %c0_i32 = arith.constant 0 : i32
    %c0_i32_0 = arith.constant 0 : i32
    %c0_i32_1 = arith.constant 0 : i32
    return %arg0, %c0_i32, %c0_i32_0 : i32, i32, i32
  }
}

</mosaic_0001>

<llo_original>
// kernel: tpu_custom_call.1
$region0: #{tpu_custom_call.1}
  #allocation0 [shape = 'u32[]', space=smem, size = 0x4, offset = 0x4, fixed_abs, tag = 'smem constant byte address 0x4 - core index']
  #allocation1 [shape = 'u32[144,128]{1,0:T(1,128)}', space=vmem, size = 0x12000, scoped, tag = 'internal scratch']
  #allocation2 [shape = 'f32[8,32]{1,0:T(8,128)}', space=vmem, size = 0x1000, scoped, tag = 'scratch operand']
  #allocation3 [shape = 'f32[8,32]{1,0:T(8,128)}', space=vmem, size = 0x1000, scoped, tag = 'scratch operand']
  %s0 = inlined_call_operand.vmem [shape: f32[2,8,32], index: 0, kind: input, shape index: {}]
  %s1 = inlined_call_operand.vmem [shape: f32[2,1,8], index: 1, kind: input, shape index: {}]
  %s2 = inlined_call_operand.vmem [shape: f32[2,32,96], index: 2, kind: input, shape index: {}]
  %s3 = inlined_call_operand.vmem [shape: f32[2,32,32], index: 3, kind: input, shape index: {}]
  %s4 = inlined_call_operand.vmem [shape: f32[2,32,64], index: 4, kind: input, shape index: {}]
  %s5 = inlined_call_operand.vmem [shape: f32[2,1,64], index: 5, kind: input, shape index: {}]
  %s6 = inlined_call_operand.vmem [shape: f32[2,64,32], index: 6, kind: input, shape index: {}]
  %s7 = inlined_call_operand.vmem [shape: f32[2,9,32], index: 7, kind: input, shape index: {}]
  %s8 = inlined_call_operand.vmem [shape: f32[2,32], index: 8, kind: input, shape index: {}]
  %s9 = inlined_call_operand.hbm [shape: f32[2,8,32], index: 9, kind: output, shape index: {}]
  %s10 = sld [smem:[#allocation0]]
  $region77: #{tpu_custom_call.1} parent=0
    _
  %s12 = ssub.s32 1, %s10
  %s13 = scalar_select 0, %s12, %s10
  $region1: #{tpu_custom_call.1} parent=0
    #allocation4 [shape = 'u8[8192]{0}', space=vmem, size = 0x2000, scoped, tag = 'output window, operand 0']
    #allocation5 [shape = 's32[2]{0}', space=sflag, size = 0x8, scoped, tag = 'scoped memory for tpu_custom_call.1']
    %14 = vsyncpa [#allocation5], 0
    %s15 = scalar_lea.sflag [#allocation5], 1
    %16 = vsyncpa %s15, 0
    loop: start=0, step=1, limit=6
    $region2: #{tpu_custom_call.1} parent=1 // loop_pre_header
      _
    $region3: #{tpu_custom_call.1} parent=1 // loop_header
      %s18 = sphi 0, %s22
      %p19 = scmp.ge.s32.totalorder %s18, 6
      %s25 = sphi 0, %s37
      %s26 = sphi 0, %s33
      %s27 = sphi 0, %s25
      %s28 = sphi 0, %s26
      %s29 = sphi 0, %s27
      %s30 = sphi 0, %s28
      %s40 = sphi 0, %s42
      %s43 = sphi 0, %s40
      %s44 = sphi 0, %s43
      %s60 = sphi 0, %s44
      %s66 = sphi 0, %s68
      %s69 = sphi 0, %s66
      %s70 = sphi 0, %s69
      %s86 = sphi 0, %s70
      %s92 = sphi 0, %s94
      %s95 = sphi 0, %s92
      %s96 = sphi 0, %s95
      %s112 = sphi 0, %s96
      %s118 = sphi 0, %s120
      %s121 = sphi 0, %s118
      %s122 = sphi 0, %s121
      %s138 = sphi 0, %s122
      %s144 = sphi 0, %s146
      %s147 = sphi 0, %s144
      %s148 = sphi 0, %s147
      %s164 = sphi 0, %s148
      %s170 = sphi 0, %s172
      %s173 = sphi 0, %s170
      %s174 = sphi 0, %s173
      %s190 = sphi 0, %s174
      %s196 = sphi 0, %s198
      %s199 = sphi 0, %s196
      %s200 = sphi 0, %s199
      %s216 = sphi 0, %s200
      %s222 = sphi 0, %s224
      %s225 = sphi 0, %s222
      %s226 = sphi 0, %s225
      %s242 = sphi 0, %s226
      %s246 = sphi 0, %s246
      %s248 = sphi 0, %s246
      %s249 = sphi 0, %s248
      %s263 = sphi 0, %s249
      %s269 = sphi 0, %s271
      %s272 = sphi 0, %s269
      %s273 = sphi 0, %s272
      %s289 = sphi 0, %s273
    $region4: #{tpu_custom_call.1} parent=1 // loop_header_branch
      %21 = sbr.rel (%p19) target = $region8
    $region5: #{tpu_custom_call.1} parent=1 // loop_body
      %s23 = ssub.s32 %s18, 1
      %s24 = ssub.s32 %s18, 2
      %s31 = sadd.s32 1, %s26
      %p32 = scmp.ge.s32.totalorder %s31, 2
      %s33 = scalar_select %p32, 0, %s31
      %s34 = sadd.s32 1, %s25
      %s35 = scalar_select %p32, %s34, %s25
      %p36 = scmp.ge.s32.totalorder %s35, 2
      %s37 = scalar_select %p36, 0, %s35
      %s38 = ssub.s32 %s25, %s37
      %p39 = scmp.eq.s32.totalorder %s38, 0
      %s41 = sadd.s32 %s40, 1
      %s42 = scalar_select %p39, %s40, %s41
      %p45 = pneg %p39
      %p46 = scmp.eq.s32.totalorder %s18, 3
      %p47 = por %p45, %p46
      %p48 = scmp.ne.s32.totalorder %s40, %s43
      %p49 = scmp.eq.s32.totalorder %s18, 0
      %p50 = por %p48, %p49
      %p51 = scmp.ne.s32.totalorder %s40, %s43
      %p52 = scmp.eq.s32.totalorder %s23, 3
      %p53 = por %p51, %p52
      %p54 = scmp.ne.s32.totalorder %s43, %s44
      %p55 = scmp.eq.s32.totalorder %s23, 0
      %p56 = por %p54, %p55
      %p57 = scmp.ne.s32.totalorder %s43, %s44
      %p58 = scmp.eq.s32.totalorder %s24, 3
      %p59 = por %p57, %p58
      %p61 = scmp.ne.s32.totalorder %s44, %s60
      %p62 = scmp.eq.s32.totalorder %s24, 0
      %p63 = por %p61, %p62
      %s64 = ssub.s32 %s25, %s37
      %p65 = scmp.eq.s32.totalorder %s64, 0
      %s67 = sadd.s32 %s66, 1
      %s68 = scalar_select %p65, %s66, %s67
      %p71 = pneg %p65
      %p72 = scmp.eq.s32.totalorder %s18, 3
      %p73 = por %p71, %p72
      %p74 = scmp.ne.s32.totalorder %s66, %s69
      %p75 = scmp.eq.s32.totalorder %s18, 0
      %p76 = por %p74, %p75
      %p77 = scmp.ne.s32.totalorder %s66, %s69
      %p78 = scmp.eq.s32.totalorder %s23, 3
      %p79 = por %p77, %p78
      %p80 = scmp.ne.s32.totalorder %s69, %s70
      %p81 = scmp.eq.s32.totalorder %s23, 0
      %p82 = por %p80, %p81
      %p83 = scmp.ne.s32.totalorder %s69, %s70
      %p84 = scmp.eq.s32.totalorder %s24, 3
      %p85 = por %p83, %p84
      %p87 = scmp.ne.s32.totalorder %s70, %s86
      %p88 = scmp.eq.s32.totalorder %s24, 0
      %p89 = por %p87, %p88
      %s90 = ssub.s32 %s26, %s33
      %p91 = scmp.eq.s32.totalorder %s90, 0
      %s93 = sadd.s32 %s92, 1
      %s94 = scalar_select %p91, %s92, %s93
      %p97 = pneg %p91
      %p98 = scmp.eq.s32.totalorder %s18, 3
      %p99 = por %p97, %p98
      %p100 = scmp.ne.s32.totalorder %s92, %s95
      %p101 = scmp.eq.s32.totalorder %s18, 0
      %p102 = por %p100, %p101
      %p103 = scmp.ne.s32.totalorder %s92, %s95
      %p104 = scmp.eq.s32.totalorder %s23, 3
      %p105 = por %p103, %p104
      %p106 = scmp.ne.s32.totalorder %s95, %s96
      %p107 = scmp.eq.s32.totalorder %s23, 0
      %p108 = por %p106, %p107
      %p109 = scmp.ne.s32.totalorder %s95, %s96
      %p110 = scmp.eq.s32.totalorder %s24, 3
      %p111 = por %p109, %p110
      %p113 = scmp.ne.s32.totalorder %s96, %s112
      %p114 = scmp.eq.s32.totalorder %s24, 0
      %p115 = por %p113, %p114
      %s116 = ssub.s32 %s26, %s33
      %p117 = scmp.eq.s32.totalorder %s116, 0
      %s119 = sadd.s32 %s118, 1
      %s120 = scalar_select %p117, %s118, %s119
      %p123 = pneg %p117
      %p124 = scmp.eq.s32.totalorder %s18, 3
      %p125 = por %p123, %p124
      %p126 = scmp.ne.s32.totalorder %s118, %s121
      %p127 = scmp.eq.s32.totalorder %s18, 0
      %p128 = por %p126, %p127
      %p129 = scmp.ne.s32.totalorder %s118, %s121
      %p130 = scmp.eq.s32.totalorder %s23, 3
      %p131 = por %p129, %p130
      %p132 = scmp.ne.s32.totalorder %s121, %s122
      %p133 = scmp.eq.s32.totalorder %s23, 0
      %p134 = por %p132, %p133
      %p135 = scmp.ne.s32.totalorder %s121, %s122
      %p136 = scmp.eq.s32.totalorder %s24, 3
      %p137 = por %p135, %p136
      %p139 = scmp.ne.s32.totalorder %s122, %s138
      %p140 = scmp.eq.s32.totalorder %s24, 0
      %p141 = por %p139, %p140
      %s142 = ssub.s32 %s26, %s33
      %p143 = scmp.eq.s32.totalorder %s142, 0
      %s145 = sadd.s32 %s144, 1
      %s146 = scalar_select %p143, %s144, %s145
      %p149 = pneg %p143
      %p150 = scmp.eq.s32.totalorder %s18, 3
      %p151 = por %p149, %p150
      %p152 = scmp.ne.s32.totalorder %s144, %s147
      %p153 = scmp.eq.s32.totalorder %s18, 0
      %p154 = por %p152, %p153
      %p155 = scmp.ne.s32.totalorder %s144, %s147
      %p156 = scmp.eq.s32.totalorder %s23, 3
      %p157 = por %p155, %p156
      %p158 = scmp.ne.s32.totalorder %s147, %s148
      %p159 = scmp.eq.s32.totalorder %s23, 0
      %p160 = por %p158, %p159
      %p161 = scmp.ne.s32.totalorder %s147, %s148
      %p162 = scmp.eq.s32.totalorder %s24, 3
      %p163 = por %p161, %p162
      %p165 = scmp.ne.s32.totalorder %s148, %s164
      %p166 = scmp.eq.s32.totalorder %s24, 0
      %p167 = por %p165, %p166
      %s168 = ssub.s32 %s26, %s33
      %p169 = scmp.eq.s32.totalorder %s168, 0
      %s171 = sadd.s32 %s170, 1
      %s172 = scalar_select %p169, %s170, %s171
      %p175 = pneg %p169
      %p176 = scmp.eq.s32.totalorder %s18, 3
      %p177 = por %p175, %p176
      %p178 = scmp.ne.s32.totalorder %s170, %s173
      %p179 = scmp.eq.s32.totalorder %s18, 0
      %p180 = por %p178, %p179
      %p181 = scmp.ne.s32.totalorder %s170, %s173
      %p182 = scmp.eq.s32.totalorder %s23, 3
      %p183 = por %p181, %p182
      %p184 = scmp.ne.s32.totalorder %s173, %s174
      %p185 = scmp.eq.s32.totalorder %s23, 0
      %p186 = por %p184, %p185
      %p187 = scmp.ne.s32.totalorder %s173, %s174
      %p188 = scmp.eq.s32.totalorder %s24, 3
      %p189 = por %p187, %p188
      %p191 = scmp.ne.s32.totalorder %s174, %s190
      %p192 = scmp.eq.s32.totalorder %s24, 0
      %p193 = por %p191, %p192
      %s194 = ssub.s32 %s26, %s33
      %p195 = scmp.eq.s32.totalorder %s194, 0
      %s197 = sadd.s32 %s196, 1
      %s198 = scalar_select %p195, %s196, %s197
      %p201 = pneg %p195
      %p202 = scmp.eq.s32.totalorder %s18, 3
      %p203 = por %p201, %p202
      %p204 = scmp.ne.s32.totalorder %s196, %s199
      %p205 = scmp.eq.s32.totalorder %s18, 0
      %p206 = por %p204, %p205
      %p207 = scmp.ne.s32.totalorder %s196, %s199
      %p208 = scmp.eq.s32.totalorder %s23, 3
      %p209 = por %p207, %p208
      %p210 = scmp.ne.s32.totalorder %s199, %s200
      %p211 = scmp.eq.s32.totalorder %s23, 0
      %p212 = por %p210, %p211
      %p213 = scmp.ne.s32.totalorder %s199, %s200
      %p214 = scmp.eq.s32.totalorder %s24, 3
      %p215 = por %p213, %p214
      %p217 = scmp.ne.s32.totalorder %s200, %s216
      %p218 = scmp.eq.s32.totalorder %s24, 0
      %p219 = por %p217, %p218
      %s220 = ssub.s32 %s26, %s33
      %p221 = scmp.eq.s32.totalorder %s220, 0
      %s223 = sadd.s32 %s222, 1
      %s224 = scalar_select %p221, %s222, %s223
      %p227 = pneg %p221
      %p228 = scmp.eq.s32.totalorder %s18, 3
      %p229 = por %p227, %p228
      %p230 = scmp.ne.s32.totalorder %s222, %s225
      %p231 = scmp.eq.s32.totalorder %s18, 0
      %p232 = por %p230, %p231
      %p233 = scmp.ne.s32.totalorder %s222, %s225
      %p234 = scmp.eq.s32.totalorder %s23, 3
      %p235 = por %p233, %p234
      %p236 = scmp.ne.s32.totalorder %s225, %s226
      %p237 = scmp.eq.s32.totalorder %s23, 0
      %p238 = por %p236, %p237
      %p239 = scmp.ne.s32.totalorder %s225, %s226
      %p240 = scmp.eq.s32.totalorder %s24, 3
      %p241 = por %p239, %p240
      %p243 = scmp.ne.s32.totalorder %s226, %s242
      %p244 = scmp.eq.s32.totalorder %s24, 0
      %p245 = por %p243, %p244
      %s247 = sadd.s32 %s246, 1
      %p250 = scmp.eq.s32.totalorder %s18, 3
      %p251 = scmp.ne.s32.totalorder %s246, %s248
      %p252 = scmp.eq.s32.totalorder %s18, 0
      %p253 = por %p251, %p252
      %p254 = scmp.ne.s32.totalorder %s246, %s248
      %p255 = scmp.eq.s32.totalorder %s23, 3
      %p256 = por %p254, %p255
      %p257 = scmp.ne.s32.totalorder %s248, %s249
      %p258 = scmp.eq.s32.totalorder %s23, 0
      %p259 = por %p257, %p258
      %p260 = scmp.ne.s32.totalorder %s248, %s249
      %p261 = scmp.eq.s32.totalorder %s24, 3
      %p262 = por %p260, %p261
      %p264 = scmp.ne.s32.totalorder %s249, %s263
      %p265 = scmp.eq.s32.totalorder %s24, 0
      %p266 = por %p264, %p265
      %s267 = ssub.s32 %s25, %s37
      %p268 = scmp.eq.s32.totalorder %s267, 0
      %s270 = sadd.s32 %s269, 1
      %s271 = scalar_select %p268, %s269, %s270
      %p274 = pneg %p268
      %p275 = scmp.eq.s32.totalorder %s18, 3
      %p276 = por %p274, %p275
      %p277 = scmp.ne.s32.totalorder %s269, %s272
      %p278 = scmp.eq.s32.totalorder %s18, 0
      %p279 = por %p277, %p278
      %p280 = scmp.ne.s32.totalorder %s269, %s272
      %p281 = scmp.eq.s32.totalorder %s23, 3
      %p282 = por %p280, %p281
      %p283 = scmp.ne.s32.totalorder %s272, %s273
      %p284 = scmp.eq.s32.totalorder %s23, 0
      %p285 = por %p283, %p284
      %p286 = scmp.ne.s32.totalorder %s272, %s273
      %p287 = scmp.eq.s32.totalorder %s24, 3
      %p288 = por %p286, %p287
      %p290 = scmp.ne.s32.totalorder %s273, %s289
      %p291 = scmp.eq.s32.totalorder %s24, 0
      %p292 = por %p290, %p291
      %p293 = scmp.le.s32.totalorder 1, %s18
      %p294 = scmp.lt.s32.totalorder %s18, 5
      %p295 = pnand %p293, %p294
      %p296 = pneg %p295
      // Predicated region
      $region9: #{tpu_custom_call.1} parent=5 // pred_check
        _
      $region10: #{tpu_custom_call.1} parent=5 // pred_check_branch
        %298 = sbr.rel (%p295) target = $region12
      $region11: #{tpu_custom_call.1} parent=5 // pred_region
        %s299 = ssub.s32 %s18, 1
        // Predicated region
        $region13: #{tpu_custom_call.1} parent=11 // pred_check
          %p300 = pneg %p259
        $region14: #{tpu_custom_call.1} parent=11 // pred_check_branch
          %302 = sbr.rel (%p300) target = $region16
        $region15: #{tpu_custom_call.1} parent=11 // pred_region
          _
        $region16: #{tpu_custom_call.1} parent=11 // pred_fallthru
          _
      $region12: #{tpu_custom_call.1} parent=5 // pred_fallthru
        _
      %p303 = scmp.lt.s32.totalorder %s18, 4
      // Predicated region
      $region17: #{tpu_custom_call.1} parent=5 // pred_check
        %p304 = pneg %p303
      $region18: #{tpu_custom_call.1} parent=5 // pred_check_branch
        %306 = sbr.rel (%p304) target = $region20
      $region19: #{tpu_custom_call.1} parent=5 // pred_region
        // Predicated region
        $region21: #{tpu_custom_call.1} parent=19 // pred_check
          %p307 = pneg %p50
        $region22: #{tpu_custom_call.1} parent=19 // pred_check_branch
          %309 = sbr.rel (%p307) target = $region24
        $region23: #{tpu_custom_call.1} parent=19 // pred_region
          %p310 = scmp.lt.s32.totalorder %s25, 1
          %s311 = scalar_select %p310, %s25, 1
          %s312 = smul.addr %s311, 8
          %s313 = scalar_lea.vmem %s0, %s312
        $region24: #{tpu_custom_call.1} parent=19 // pred_fallthru
          _
        // Predicated region
        $region25: #{tpu_custom_call.1} parent=19 // pred_check
          %p314 = pneg %p76
        $region26: #{tpu_custom_call.1} parent=19 // pred_check_branch
          %316 = sbr.rel (%p314) target = $region28
        $region27: #{tpu_custom_call.1} parent=19 // pred_region
          %p317 = scmp.lt.s32.totalorder %s25, 1
          %s318 = scalar_select %p317, %s25, 1
          %s319 = scalar_lea.vmem %s1, %s318
        $region28: #{tpu_custom_call.1} parent=19 // pred_fallthru
          _
        // Predicated region
        $region29: #{tpu_custom_call.1} parent=19 // pred_check
          %p320 = pneg %p102
        $region30: #{tpu_custom_call.1} parent=19 // pred_check_branch
          %322 = sbr.rel (%p320) target = $region32
        $region31: #{tpu_custom_call.1} parent=19 // pred_region
          %p323 = scmp.lt.s32.totalorder %s26, 1
          %s324 = scalar_select %p323, %s26, 1
          %s325 = smul.addr %s324, 4
          %s326 = smul.addr %s325, 8
          %s327 = scalar_lea.vmem %s2, %s326
        $region32: #{tpu_custom_call.1} parent=19 // pred_fallthru
          _
        // Predicated region
        $region33: #{tpu_custom_call.1} parent=19 // pred_check
          %p328 = pneg %p128
        $region34: #{tpu_custom_call.1} parent=19 // pred_check_branch
          %330 = sbr.rel (%p328) target = $region36
        $region35: #{tpu_custom_call.1} parent=19 // pred_region
          %p331 = scmp.lt.s32.totalorder %s26, 1
          %s332 = scalar_select %p331, %s26, 1
          %s333 = smul.addr %s332, 4
          %s334 = smul.addr %s333, 8
          %s335 = scalar_lea.vmem %s3, %s334
        $region36: #{tpu_custom_call.1} parent=19 // pred_fallthru
          _
        // Predicated region
        $region37: #{tpu_custom_call.1} parent=19 // pred_check
          %p336 = pneg %p154
        $region38: #{tpu_custom_call.1} parent=19 // pred_check_branch
          %338 = sbr.rel (%p336) target = $region40
        $region39: #{tpu_custom_call.1} parent=19 // pred_region
          %p339 = scmp.lt.s32.totalorder %s26, 1
          %s340 = scalar_select %p339, %s26, 1
          %s341 = smul.addr %s340, 4
          %s342 = smul.addr %s341, 8
          %s343 = scalar_lea.vmem %s4, %s342
        $region40: #{tpu_custom_call.1} parent=19 // pred_fallthru
          _
        // Predicated region
        $region41: #{tpu_custom_call.1} parent=19 // pred_check
          %p344 = pneg %p180
        $region42: #{tpu_custom_call.1} parent=19 // pred_check_branch
          %346 = sbr.rel (%p344) target = $region44
        $region43: #{tpu_custom_call.1} parent=19 // pred_region
          %p347 = scmp.lt.s32.totalorder %s26, 1
          %s348 = scalar_select %p347, %s26, 1
          %s349 = scalar_lea.vmem %s5, %s348
        $region44: #{tpu_custom_call.1} parent=19 // pred_fallthru
          _
        // Predicated region
        $region45: #{tpu_custom_call.1} parent=19 // pred_check
          %p350 = pneg %p206
        $region46: #{tpu_custom_call.1} parent=19 // pred_check_branch
          %352 = sbr.rel (%p350) target = $region48
        $region47: #{tpu_custom_call.1} parent=19 // pred_region
          %p353 = scmp.lt.s32.totalorder %s26, 1
          %s354 = scalar_select %p353, %s26, 1
          %s355 = smul.addr %s354, 8
          %s356 = smul.addr %s355, 8
          %s357 = scalar_lea.vmem %s6, %s356
        $region48: #{tpu_custom_call.1} parent=19 // pred_fallthru
          _
        // Predicated region
        $region49: #{tpu_custom_call.1} parent=19 // pred_check
          %p358 = pneg %p232
        $region50: #{tpu_custom_call.1} parent=19 // pred_check_branch
          %360 = sbr.rel (%p358) target = $region52
        $region51: #{tpu_custom_call.1} parent=19 // pred_region
          %p361 = scmp.lt.s32.totalorder %s26, 1
          %s362 = scalar_select %p361, %s26, 1
          %s363 = smul.addr %s362, 2
          %s364 = smul.addr %s363, 8
          %s365 = scalar_lea.vmem %s7, %s364
        $region52: #{tpu_custom_call.1} parent=19 // pred_fallthru
          _
      $region20: #{tpu_custom_call.1} parent=5 // pred_fallthru
        _
      %p366 = scmp.le.s32.totalorder 1, %s18
      %p367 = scmp.lt.s32.totalorder %s18, 5
      %p368 = pnand %p366, %p367
      %p369 = pneg %p368
      // Predicated region
      $region53: #{tpu_custom_call.1} parent=5 // pred_check
        _
      $region54: #{tpu_custom_call.1} parent=5 // pred_check_branch
        %371 = sbr.rel (%p368) target = $region56
      $region55: #{tpu_custom_call.1} parent=5 // pred_region
        %s372 = ssub.s32 %s18, 1
        %p373 = scmp.lt.s32.totalorder %s27, 1
        %s374 = scalar_select %p373, %s27, 1
        %s375 = smul.addr %s374, 8
        %s376 = scalar_lea.vmem %s0, %s375
        %p377 = pneg %p56
        %p378 = pneg %p53
        %p379 = scmp.lt.s32.totalorder %s27, 1
        %s380 = scalar_select %p379, %s27, 1
        %s381 = scalar_lea.vmem %s1, %s380
        %p382 = pneg %p82
        %p383 = pneg %p79
        %p384 = scmp.lt.s32.totalorder %s28, 1
        %s385 = scalar_select %p384, %s28, 1
        %s386 = smul.addr %s385, 4
        %s387 = smul.addr %s386, 8
        %s388 = scalar_lea.vmem %s2, %s387
        %p389 = pneg %p108
        %p390 = pneg %p105
        %p391 = scmp.lt.s32.totalorder %s28, 1
        %s392 = scalar_select %p391, %s28, 1
        %s393 = smul.addr %s392, 4
        %s394 = smul.addr %s393, 8
        %s395 = scalar_lea.vmem %s3, %s394
        %p396 = pneg %p134
        %p397 = pneg %p131
        %p398 = scmp.lt.s32.totalorder %s28, 1
        %s399 = scalar_select %p398, %s28, 1
        %s400 = smul.addr %s399, 4
        %s401 = smul.addr %s400, 8
        %s402 = scalar_lea.vmem %s4, %s401
        %p403 = pneg %p160
        %p404 = pneg %p157
        %p405 = scmp.lt.s32.totalorder %s28, 1
        %s406 = scalar_select %p405, %s28, 1
        %s407 = scalar_lea.vmem %s5, %s406
        %p408 = pneg %p186
        %p409 = pneg %p183
        %p410 = scmp.lt.s32.totalorder %s28, 1
        %s411 = scalar_select %p410, %s28, 1
        %s412 = smul.addr %s411, 8
        %s413 = smul.addr %s412, 8
        %s414 = scalar_lea.vmem %s6, %s413
        %p415 = pneg %p212
        %p416 = pneg %p209
        %p417 = scmp.lt.s32.totalorder %s28, 1
        %s418 = scalar_select %p417, %s28, 1
        %s419 = smul.addr %s418, 2
        %s420 = smul.addr %s419, 8
        %s421 = scalar_lea.vmem %s7, %s420
        %p422 = pneg %p238
        %p423 = pneg %p235
        %p424 = pneg %p259
        %p425 = pneg %p256
        %p426 = pneg %p285
        %p427 = pneg %p282
        %s428 = sand.u32 %s272, 1
        %s429 = scalar_lea.sflag [#allocation5], %s428
        %s430 = sand.u32 %s272, 1
        %s431 = smul.addr %s430, 8
        %s432 = scalar_lea.vmem [#allocation4], %s431
        %p433 = scmp.lt.s32.totalorder %s27, 1
        %s434 = scalar_select %p433, %s27, 1
        %s435 = smul.addr %s434, 8
        %s436 = scalar_lea.vmem %s0, %s435
        %p437 = scmp.lt.s32.totalorder %s27, 1
        %s438 = scalar_select %p437, %s27, 1
        %s439 = scalar_lea.vmem %s1, %s438
        %p440 = scmp.lt.s32.totalorder %s28, 1
        %s441 = scalar_select %p440, %s28, 1
        %s442 = smul.addr %s441, 4
        %s443 = smul.addr %s442, 8
        %s444 = scalar_lea.vmem %s2, %s443
        %p445 = scmp.lt.s32.totalorder %s28, 1
        %s446 = scalar_select %p445, %s28, 1
        %s447 = smul.addr %s446, 4
        %s448 = smul.addr %s447, 8
        %s449 = scalar_lea.vmem %s3, %s448
        %p450 = scmp.lt.s32.totalorder %s28, 1
        %s451 = scalar_select %p450, %s28, 1
        %s452 = smul.addr %s451, 4
        %s453 = smul.addr %s452, 8
        %s454 = scalar_lea.vmem %s4, %s453
        %p455 = scmp.lt.s32.totalorder %s28, 1
        %s456 = scalar_select %p455, %s28, 1
        %s457 = scalar_lea.vmem %s5, %s456
        %p458 = scmp.lt.s32.totalorder %s28, 1
        %s459 = scalar_select %p458, %s28, 1
        %s460 = smul.addr %s459, 8
        %s461 = smul.addr %s460, 8
        %s462 = scalar_lea.vmem %s6, %s461
        %p463 = scmp.lt.s32.totalorder %s28, 1
        %s464 = scalar_select %p463, %s28, 1
        %s465 = smul.addr %s464, 2
        %s466 = smul.addr %s465, 8
        %s467 = scalar_lea.vmem %s7, %s466
        %p468 = scmp.eq.s32.totalorder %s28, 0
        // Predicated region
        $region57: #{tpu_custom_call.1} parent=55 // pred_check
          %p469 = pneg %p468
        $region58: #{tpu_custom_call.1} parent=55 // pred_check_branch
          %471 = sbr.rel (%p469) target = $region60
        $region59: #{tpu_custom_call.1} parent=55 // pred_region
          %v472 = vld [vmem:[%s436] sm:$0xff]
          %vm473 = vcmask 261120
          %474 = vst.msk [vmem:[#allocation2] sm:$0xff] %vm473, %v472
        $region60: #{tpu_custom_call.1} parent=55 // pred_fallthru
          _
        %v475 = vld [vmem:[#allocation2] sm:$0xff]
        %v476 = vld [vmem:[%s467] sm:$0xff]
        %v477 = vld [vmem:[%s467 + $0x8] sm:$0x1]
        %vm478 = vcmask 261120
        %v479 = vsel %vm478, %v475, 0.0
        %480 = vadd.xlane.f32.xlu0 %v479
        %v481 = vpop.xlane.xlu0 %480
        %v482 = vrcp.pop 32.0
        %v483 = vmul.f32 %v481, %v482
        %v484 = vsub.f32 %v475, %v483
        %v485 = vmul.f32 %v484, %v484
        %v486 = vsel %vm478, %v485, 0.0
        %487 = vadd.xlane.f32.xlu0 %v486
        %v488 = vpop.xlane.xlu0 %487
        %v489 = vmul.f32 %v488, 0.032258064
        %v490 = vrsqrt.pop %v489
        %v491 = vmul.f32 %v489, %v490
        %vm492 = vcmp.eq.f32.partialorder %v489, inf
        %v493 = vsel %vm492, %v489, %v491
        %vm494 = vcmp.eq.f32.partialorder %v489, 0.0
        %v495 = vand.u32 %v489, 2147483648
        %v496 = vsel %vm494, %v495, %v493
        %v497 = vadd.f32 %v496, 1e-06
        %v498 = vrcp.pop %v497
        %v499 = vlaneseq
        %v500 = vshrl.u32 %v499, 7
        %v501 = vsub.s32 0, %v500
        %v502 = vrot.slane %v476, %v501
        %v503 = vmul.f32 %v502, %v484
        %v504 = vmul.f32 %v503, %v498
        %v505 = vlaneseq
        %v506 = vshrl.u32 %v505, 7
        %v507 = vsub.s32 1, %v506
        %v508 = vrot.slane %v476, %v507
        %v509 = vadd.f32 %v504, %v508
        %v510 = vld [vmem:[%s444] sm:$0xff]
        %v511 = vld [vmem:[%s444 + $0x8] sm:$0xff]
        %v512 = vld [vmem:[%s444 + $0x10] sm:$0xff]
        %v513 = vld [vmem:[%s444 + $0x18] sm:$0xff]
        %v515 = vsel %vm478, %v509, 0
        %517 = vmatprep.subr.mxu0 0.0
        %518 = vmatpush1.msra.mxu0 0.0
        %519 = vmatprep.subr.mxu0 0.0
        %520 = vmatpush1.msra.mxu0 0.0
        %521 = vmatprep.subr.mxu0 0.0
        %522 = vmatpush1.msra.mxu0 0.0
        %523 = vmatprep.subr.mxu0 0.0
        %524 = vmatpush1.msra.mxu0 0.0
        %525 = vmatprep.subr.mxu0 0.0
        %526 = vmatpush1.msra.mxu0 0.0
        %527 = vmatprep.subr.mxu0 0.0
        %528 = vmatpush1.msra.mxu0 0.0
        %529 = vmatprep.subr.mxu0 0.0
        %530 = vmatpush1.msra.mxu0 0.0
        %531 = vmatprep.subr.mxu0 0.0
        %532 = vmatpush1.msra.mxu0 0.0
        %533 = vmatprep.subr.mxu0 0.0
        %534 = vmatpush1.msra.mxu0 0.0
        %535 = vmatprep.subr.mxu0 0.0
        %536 = vmatpush1.msra.mxu0 0.0
        %537 = vmatprep.subr.mxu0 0.0
        %538 = vmatpush1.msra.mxu0 0.0
        %539 = vmatprep.subr.mxu0 0.0
        %540 = vmatpush1.msra.mxu0 0.0
        %541 = vmatprep.subr.mxu0 0.0
        %542 = vmatpush1.msra.mxu0 %v513
        %543 = vmatprep.subr.mxu0 0.0
        %544 = vmatpush1.msra.mxu0 %v512
        %545 = vmatprep.subr.mxu0 0.0
        %546 = vmatpush1.msra.mxu0 %v511
        %547 = vmatprep.subr.mxu0 0.0
        %548 = vmatpush1.msra.mxu0 %v510
        %549 = vmatprep.subr.mxu0 0.0
        %550 = vmatpush2.msra.mxu0 0.0
        %551 = vmatprep.subr.mxu0 0.0
        %552 = vmatpush2.msra.mxu0 0.0
        %553 = vmatprep.subr.mxu0 0.0
        %554 = vmatpush2.msra.mxu0 0.0
        %555 = vmatprep.subr.mxu0 0.0
        %556 = vmatpush2.msra.mxu0 0.0
        %557 = vmatprep.subr.mxu0 0.0
        %558 = vmatpush2.msra.mxu0 0.0
        %559 = vmatprep.subr.mxu0 0.0
        %560 = vmatpush2.msra.mxu0 0.0
        %561 = vmatprep.subr.mxu0 0.0
        %562 = vmatpush2.msra.mxu0 0.0
        %563 = vmatprep.subr.mxu0 0.0
        %564 = vmatpush2.msra.mxu0 0.0
        %565 = vmatprep.subr.mxu0 0.0
        %566 = vmatpush2.msra.mxu0 0.0
        %567 = vmatprep.subr.mxu0 0.0
        %568 = vmatpush2.msra.mxu0 0.0
        %569 = vmatprep.subr.mxu0 0.0
        %570 = vmatpush2.msra.mxu0 0.0
        %571 = vmatprep.subr.mxu0 0.0
        %572 = vmatpush2.msra.mxu0 0.0
        %573 = vmatprep.subr.mxu0 0.0
        %574 = vmatpush2.msra.mxu0 0.0
        %575 = vmatprep.subr.mxu0 0.0
        %576 = vmatpush2.msra.mxu0 0.0
        %577 = vmatprep.subr.mxu0 0.0
        %578 = vmatpush2.msra.mxu0 0.0
        %579 = vmatprep.subr.mxu0 0.0
        %580 = vmatpush2.msra.mxu0 0.0
        %581 = vmatprep.mubr.f32.mxu0 0.0
        %582 = vmatmul.mubr.f32.gmra.mxu0 %v515
        %v583 = vpop.f32.mrf.mxu0
        %v584 = vadd.f32 0.0, %v583
        %v585 = vpop.f32.mrf.mxu0
        %586 = vdwg.mxu0
        %v587 = vlaneseq
        %v588 = vshrl.u32 %v587, 7
        %v589 = vsub.s32 2, %v588
        %v590 = vrot.slane %v476, %v589
        %v591 = vadd.f32 %v584, %v590
        %v592 = vmul.f32 %v591, 0.35355338
        %v593 = vlaneseq
        %v594 = vshrl.u32 %v593, 7
        %v595 = vsub.s32 3, %v594
        %v596 = vrot.slane %v476, %v595
        %598 = vrot.lane.b32.xlu0 %v596, 32
        %v599 = vpop.permute.xlu0 %598
        %v601 = vadd.f32 %v584, %v599
        %v602 = vlaneseq
        %v603 = vshrl.u32 %v602, 7
        %v604 = vsub.s32 4, %v603
        %v605 = vrot.slane %v476, %v604
        %607 = vrot.lane.b32.xlu0 %v605, 64
        %v608 = vpop.permute.xlu0 %607
        %v610 = vadd.f32 %v584, %v608
        %v611 = vld [vmem:[%s439] sm:$0x1]
        %613 = vrot.lane.b32.xlu0 %v601, 96
        %v614 = vpop.permute.xlu0 %613
        %vm615 = vcmask 64512
        %v617 = vsel %vm615, %v592, 0
        %v619 = vsel %vm615, %v614, 0
        %621 = vmatprep.subr.mxu0 0.0
        %622 = vmatpush1.xpose.msra.mxu0 0.0
        %623 = vmatprep.subr.mxu0 0.0
        %624 = vmatpush1.xpose.msra.mxu0 0.0
        %625 = vmatprep.subr.mxu0 0.0
        %626 = vmatpush1.xpose.msra.mxu0 0.0
        %627 = vmatprep.subr.mxu0 0.0
        %628 = vmatpush1.xpose.msra.mxu0 0.0
        %629 = vmatprep.subr.mxu0 0.0
        %630 = vmatpush1.xpose.msra.mxu0 0.0
        %631 = vmatprep.subr.mxu0 0.0
        %632 = vmatpush1.xpose.msra.mxu0 0.0
        %633 = vmatprep.subr.mxu0 0.0
        %634 = vmatpush1.xpose.msra.mxu0 0.0
        %635 = vmatprep.subr.mxu0 0.0
        %636 = vmatpush1.xpose.msra.mxu0 0.0
        %637 = vmatprep.subr.mxu0 0.0
        %638 = vmatpush1.xpose.msra.mxu0 0.0
        %639 = vmatprep.subr.mxu0 0.0
        %640 = vmatpush1.xpose.msra.mxu0 0.0
        %641 = vmatprep.subr.mxu0 0.0
        %642 = vmatpush1.xpose.msra.mxu0 0.0
        %643 = vmatprep.subr.mxu0 0.0
        %644 = vmatpush1.xpose.msra.mxu0 0.0
        %645 = vmatprep.subr.mxu0 0.0
        %646 = vmatpush1.xpose.msra.mxu0 0.0
        %647 = vmatprep.subr.mxu0 0.0
        %648 = vmatpush1.xpose.msra.mxu0 0.0
        %649 = vmatprep.subr.mxu0 0.0
        %650 = vmatpush1.xpose.msra.mxu0 0.0
        %651 = vmatprep.subr.mxu0 0.0
        %652 = vmatpush1.xpose.msra.mxu0 %v619
        %653 = vmatprep.subr.mxu0 0.0
        %654 = vmatpush2.xpose.msra.mxu0 0.0
        %655 = vmatprep.subr.mxu0 0.0
        %656 = vmatpush2.xpose.msra.mxu0 0.0
        %657 = vmatprep.subr.mxu0 0.0
        %658 = vmatpush2.xpose.msra.mxu0 0.0
        %659 = vmatprep.subr.mxu0 0.0
        %660 = vmatpush2.xpose.msra.mxu0 0.0
        %661 = vmatprep.subr.mxu0 0.0
        %662 = vmatpush2.xpose.msra.mxu0 0.0
        %663 = vmatprep.subr.mxu0 0.0
        %664 = vmatpush2.xpose.msra.mxu0 0.0
        %665 = vmatprep.subr.mxu0 0.0
        %666 = vmatpush2.xpose.msra.mxu0 0.0
        %667 = vmatprep.subr.mxu0 0.0
        %668 = vmatpush2.xpose.msra.mxu0 0.0
        %669 = vmatprep.subr.mxu0 0.0
        %670 = vmatpush2.xpose.msra.mxu0 0.0
        %671 = vmatprep.subr.mxu0 0.0
        %672 = vmatpush2.xpose.msra.mxu0 0.0
        %673 = vmatprep.subr.mxu0 0.0
        %674 = vmatpush2.xpose.msra.mxu0 0.0
        %675 = vmatprep.subr.mxu0 0.0
        %676 = vmatpush2.xpose.msra.mxu0 0.0
        %677 = vmatprep.subr.mxu0 0.0
        %678 = vmatpush2.xpose.msra.mxu0 0.0
        %679 = vmatprep.subr.mxu0 0.0
        %680 = vmatpush2.xpose.msra.mxu0 0.0
        %681 = vmatprep.subr.mxu0 0.0
        %682 = vmatpush2.xpose.msra.mxu0 0.0
        %683 = vmatprep.subr.mxu0 0.0
        %684 = vmatpush2.xpose.msra.mxu0 0.0
        %685 = vmatprep.mubr.f32.mxu0 0.0
        %686 = vmatmul.mubr.f32.gmra.mxu0 %v617
        %v687 = vpop.f32.mrf.mxu0
        %v688 = vadd.f32 0.0, %v687
        %v689 = vpop.f32.mrf.mxu0
        %690 = vdwg.mxu0
        %vm691 = vcmp.ne.f32.partialorder %v611, 0.0
        %v692 = vsel %vm691, 1, 0
        %v693 = vlaneseq
        %v694 = vshrl.u32 %v693, 7
        %v695 = vsub.s32 0, %v694
        %v696 = vrot.slane %v692, %v695
        %vm697 = vcmp.eq.s32.totalorder %v696, 1
        %v698 = vsel %vm697, %v688, -1e+09
        %v699 = vsel %vm615, %v698, -inf
        %700 = vmax.xlane.f32.xlu0 %v699
        %v701 = vpop.xlane.xlu0 %700
        %v702 = vsub.f32 %v698, %v701
        %v703 = vmul.f32 %v702, 1.442695
        %v704 = vpow.pop %v703
        %v705 = vsel %vm615, %v704, 0.0
        %706 = vadd.xlane.f32.xlu0 %v705
        %v707 = vpop.xlane.xlu0 %706
        %v708 = vrcp.pop %v707
        %v709 = vmul.f32 %v704, %v708
        %711 = vrot.lane.b32.xlu0 %v610, 64
        %v712 = vpop.permute.xlu0 %711
        %v715 = vsel %vm615, %v709, 0
        %717 = vmatprep.subr.mxu0 0.0
        %718 = vmatpush1.msra.mxu0 0.0
        %719 = vmatprep.subr.mxu0 0.0
        %720 = vmatpush1.msra.mxu0 0.0
        %721 = vmatprep.subr.mxu0 0.0
        %722 = vmatpush1.msra.mxu0 0.0
        %723 = vmatprep.subr.mxu0 0.0
        %724 = vmatpush1.msra.mxu0 0.0
        %725 = vmatprep.subr.mxu0 0.0
        %726 = vmatpush1.msra.mxu0 0.0
        %727 = vmatprep.subr.mxu0 0.0
        %728 = vmatpush1.msra.mxu0 0.0
        %729 = vmatprep.subr.mxu0 0.0
        %730 = vmatpush1.msra.mxu0 0.0
        %731 = vmatprep.subr.mxu0 0.0
        %732 = vmatpush1.msra.mxu0 0.0
        %733 = vmatprep.subr.mxu0 0.0
        %734 = vmatpush1.msra.mxu0 0.0
        %735 = vmatprep.subr.mxu0 0.0
        %736 = vmatpush1.msra.mxu0 0.0
        %737 = vmatprep.subr.mxu0 0.0
        %738 = vmatpush1.msra.mxu0 0.0
        %739 = vmatprep.subr.mxu0 0.0
        %740 = vmatpush1.msra.mxu0 0.0
        %741 = vmatprep.subr.mxu0 0.0
        %742 = vmatpush1.msra.mxu0 0.0
        %743 = vmatprep.subr.mxu0 0.0
        %744 = vmatpush1.msra.mxu0 0.0
        %745 = vmatprep.subr.mxu0 0.0
        %746 = vmatpush1.msra.mxu0 0.0
        %747 = vmatprep.subr.mxu0 0.0
        %748 = vmatpush1.msra.mxu0 %v712
        %749 = vmatprep.subr.mxu0 0.0
        %750 = vmatpush2.msra.mxu0 0.0
        %751 = vmatprep.subr.mxu0 0.0
        %752 = vmatpush2.msra.mxu0 0.0
        %753 = vmatprep.subr.mxu0 0.0
        %754 = vmatpush2.msra.mxu0 0.0
        %755 = vmatprep.subr.mxu0 0.0
        %756 = vmatpush2.msra.mxu0 0.0
        %757 = vmatprep.subr.mxu0 0.0
        %758 = vmatpush2.msra.mxu0 0.0
        %759 = vmatprep.subr.mxu0 0.0
        %760 = vmatpush2.msra.mxu0 0.0
        %761 = vmatprep.subr.mxu0 0.0
        %762 = vmatpush2.msra.mxu0 0.0
        %763 = vmatprep.subr.mxu0 0.0
        %764 = vmatpush2.msra.mxu0 0.0
        %765 = vmatprep.subr.mxu0 0.0
        %766 = vmatpush2.msra.mxu0 0.0
        %767 = vmatprep.subr.mxu0 0.0
        %768 = vmatpush2.msra.mxu0 0.0
        %769 = vmatprep.subr.mxu0 0.0
        %770 = vmatpush2.msra.mxu0 0.0
        %771 = vmatprep.subr.mxu0 0.0
        %772 = vmatpush2.msra.mxu0 0.0
        %773 = vmatprep.subr.mxu0 0.0
        %774 = vmatpush2.msra.mxu0 0.0
        %775 = vmatprep.subr.mxu0 0.0
        %776 = vmatpush2.msra.mxu0 0.0
        %777 = vmatprep.subr.mxu0 0.0
        %778 = vmatpush2.msra.mxu0 0.0
        %779 = vmatprep.subr.mxu0 0.0
        %780 = vmatpush2.msra.mxu0 0.0
        %781 = vmatprep.mubr.f32.mxu0 0.0
        %782 = vmatmul.mubr.f32.gmra.mxu0 %v715
        %v783 = vpop.f32.mrf.mxu0
        %v784 = vadd.f32 0.0, %v783
        %v785 = vpop.f32.mrf.mxu0
        %786 = vdwg.mxu0
        %787 = vst.msk [vmem:[#allocation3] sm:$0xff] %vm615, %v784
        %788 = vrot.lane.b32.xlu0 %v592, 120
        %v789 = vpop.permute.xlu0 %788
        %790 = vrot.lane.b32.xlu0 %v601, 88
        %v791 = vpop.permute.xlu0 %790
        %v792 = vsel %vm615, %v789, 0
        %v794 = vsel %vm615, %v791, 0
        %796 = vmatprep.subr.mxu0 0.0
        %797 = vmatpush1.xpose.msra.mxu0 0.0
        %798 = vmatprep.subr.mxu0 0.0
        %799 = vmatpush1.xpose.msra.mxu0 0.0
        %800 = vmatprep.subr.mxu0 0.0
        %801 = vmatpush1.xpose.msra.mxu0 0.0
        %802 = vmatprep.subr.mxu0 0.0
        %803 = vmatpush1.xpose.msra.mxu0 0.0
        %804 = vmatprep.subr.mxu0 0.0
        %805 = vmatpush1.xpose.msra.mxu0 0.0
        %806 = vmatprep.subr.mxu0 0.0
        %807 = vmatpush1.xpose.msra.mxu0 0.0
        %808 = vmatprep.subr.mxu0 0.0
        %809 = vmatpush1.xpose.msra.mxu0 0.0
        %810 = vmatprep.subr.mxu0 0.0
        %811 = vmatpush1.xpose.msra.mxu0 0.0
        %812 = vmatprep.subr.mxu0 0.0
        %813 = vmatpush1.xpose.msra.mxu0 0.0
        %814 = vmatprep.subr.mxu0 0.0
        %815 = vmatpush1.xpose.msra.mxu0 0.0
        %816 = vmatprep.subr.mxu0 0.0
        %817 = vmatpush1.xpose.msra.mxu0 0.0
        %818 = vmatprep.subr.mxu0 0.0
        %819 = vmatpush1.xpose.msra.mxu0 0.0
        %820 = vmatprep.subr.mxu0 0.0
        %821 = vmatpush1.xpose.msra.mxu0 0.0
        %822 = vmatprep.subr.mxu0 0.0
        %823 = vmatpush1.xpose.msra.mxu0 0.0
        %824 = vmatprep.subr.mxu0 0.0
        %825 = vmatpush1.xpose.msra.mxu0 0.0
        %826 = vmatprep.subr.mxu0 0.0
        %827 = vmatpush1.xpose.msra.mxu0 %v794
        %828 = vmatprep.subr.mxu0 0.0
        %829 = vmatpush2.xpose.msra.mxu0 0.0
        %830 = vmatprep.subr.mxu0 0.0
        %831 = vmatpush2.xpose.msra.mxu0 0.0
        %832 = vmatprep.subr.mxu0 0.0
        %833 = vmatpush2.xpose.msra.mxu0 0.0
        %834 = vmatprep.subr.mxu0 0.0
        %835 = vmatpush2.xpose.msra.mxu0 0.0
        %836 = vmatprep.subr.mxu0 0.0
        %837 = vmatpush2.xpose.msra.mxu0 0.0
        %838 = vmatprep.subr.mxu0 0.0
        %839 = vmatpush2.xpose.msra.mxu0 0.0
        %840 = vmatprep.subr.mxu0 0.0
        %841 = vmatpush2.xpose.msra.mxu0 0.0
        %842 = vmatprep.subr.mxu0 0.0
        %843 = vmatpush2.xpose.msra.mxu0 0.0
        %844 = vmatprep.subr.mxu0 0.0
        %845 = vmatpush2.xpose.msra.mxu0 0.0
        %846 = vmatprep.subr.mxu0 0.0
        %847 = vmatpush2.xpose.msra.mxu0 0.0
        %848 = vmatprep.subr.mxu0 0.0
        %849 = vmatpush2.xpose.msra.mxu0 0.0
        %850 = vmatprep.subr.mxu0 0.0
        %851 = vmatpush2.xpose.msra.mxu0 0.0
        %852 = vmatprep.subr.mxu0 0.0
        %853 = vmatpush2.xpose.msra.mxu0 0.0
        %854 = vmatprep.subr.mxu0 0.0
        %855 = vmatpush2.xpose.msra.mxu0 0.0
        %856 = vmatprep.subr.mxu0 0.0
        %857 = vmatpush2.xpose.msra.mxu0 0.0
        %858 = vmatprep.subr.mxu0 0.0
        %859 = vmatpush2.xpose.msra.mxu0 0.0
        %860 = vmatprep.mubr.f32.mxu0 0.0
        %861 = vmatmul.mubr.f32.gmra.mxu0 %v792
        %v862 = vpop.f32.mrf.mxu0
        %v863 = vadd.f32 0.0, %v862
        %v864 = vpop.f32.mrf.mxu0
        %865 = vdwg.mxu0
        %v866 = vsel %vm697, %v863, -1e+09
        %v867 = vsel %vm615, %v866, -inf
        %868 = vmax.xlane.f32.xlu0 %v867
        %v869 = vpop.xlane.xlu0 %868
        %v870 = vsub.f32 %v866, %v869
        %v871 = vmul.f32 %v870, 1.442695
        %v872 = vpow.pop %v871
        %v873 = vsel %vm615, %v872, 0.0
        %874 = vadd.xlane.f32.xlu0 %v873
        %v875 = vpop.xlane.xlu0 %874
        %v876 = vrcp.pop %v875
        %v877 = vmul.f32 %v872, %v876
        %878 = vrot.lane.b32.xlu0 %v610, 56
        %v879 = vpop.permute.xlu0 %878
        %v882 = vsel %vm615, %v877, 0
        %884 = vmatprep.subr.mxu0 0.0
        %885 = vmatpush1.msra.mxu0 0.0
        %886 = vmatprep.subr.mxu0 0.0
        %887 = vmatpush1.msra.mxu0 0.0
        %888 = vmatprep.subr.mxu0 0.0
        %889 = vmatpush1.msra.mxu0 0.0
        %890 = vmatprep.subr.mxu0 0.0
        %891 = vmatpush1.msra.mxu0 0.0
        %892 = vmatprep.subr.mxu0 0.0
        %893 = vmatpush1.msra.mxu0 0.0
        %894 = vmatprep.subr.mxu0 0.0
        %895 = vmatpush1.msra.mxu0 0.0
        %896 = vmatprep.subr.mxu0 0.0
        %897 = vmatpush1.msra.mxu0 0.0
        %898 = vmatprep.subr.mxu0 0.0
        %899 = vmatpush1.msra.mxu0 0.0
        %900 = vmatprep.subr.mxu0 0.0
        %901 = vmatpush1.msra.mxu0 0.0
        %902 = vmatprep.subr.mxu0 0.0
        %903 = vmatpush1.msra.mxu0 0.0
        %904 = vmatprep.subr.mxu0 0.0
        %905 = vmatpush1.msra.mxu0 0.0
        %906 = vmatprep.subr.mxu0 0.0
        %907 = vmatpush1.msra.mxu0 0.0
        %908 = vmatprep.subr.mxu0 0.0
        %909 = vmatpush1.msra.mxu0 0.0
        %910 = vmatprep.subr.mxu0 0.0
        %911 = vmatpush1.msra.mxu0 0.0
        %912 = vmatprep.subr.mxu0 0.0
        %913 = vmatpush1.msra.mxu0 0.0
        %914 = vmatprep.subr.mxu0 0.0
        %915 = vmatpush1.msra.mxu0 %v879
        %916 = vmatprep.subr.mxu0 0.0
        %917 = vmatpush2.msra.mxu0 0.0
        %918 = vmatprep.subr.mxu0 0.0
        %919 = vmatpush2.msra.mxu0 0.0
        %920 = vmatprep.subr.mxu0 0.0
        %921 = vmatpush2.msra.mxu0 0.0
        %922 = vmatprep.subr.mxu0 0.0
        %923 = vmatpush2.msra.mxu0 0.0
        %924 = vmatprep.subr.mxu0 0.0
        %925 = vmatpush2.msra.mxu0 0.0
        %926 = vmatprep.subr.mxu0 0.0
        %927 = vmatpush2.msra.mxu0 0.0
        %928 = vmatprep.subr.mxu0 0.0
        %929 = vmatpush2.msra.mxu0 0.0
        %930 = vmatprep.subr.mxu0 0.0
        %931 = vmatpush2.msra.mxu0 0.0
        %932 = vmatprep.subr.mxu0 0.0
        %933 = vmatpush2.msra.mxu0 0.0
        %934 = vmatprep.subr.mxu0 0.0
        %935 = vmatpush2.msra.mxu0 0.0
        %936 = vmatprep.subr.mxu0 0.0
        %937 = vmatpush2.msra.mxu0 0.0
        %938 = vmatprep.subr.mxu0 0.0
        %939 = vmatpush2.msra.mxu0 0.0
        %940 = vmatprep.subr.mxu0 0.0
        %941 = vmatpush2.msra.mxu0 0.0
        %942 = vmatprep.subr.mxu0 0.0
        %943 = vmatpush2.msra.mxu0 0.0
        %944 = vmatprep.subr.mxu0 0.0
        %945 = vmatpush2.msra.mxu0 0.0
        %946 = vmatprep.subr.mxu0 0.0
        %947 = vmatpush2.msra.mxu0 0.0
        %948 = vmatprep.mubr.f32.mxu0 0.0
        %949 = vmatmul.mubr.f32.gmra.mxu0 %v882
        %v950 = vpop.f32.mrf.mxu0
        %v951 = vadd.f32 0.0, %v950
        %v952 = vpop.f32.mrf.mxu0
        %953 = vdwg.mxu0
        %955 = vrot.lane.b32.xlu0 %v951, 8
        %v956 = vpop.permute.xlu0 %955
        %vm958 = vcmask 130112
        %959 = vst.msk [vmem:[#allocation3] sm:$0xff] %vm958, %v956
        %960 = vrot.lane.b32.xlu0 %v592, 112
        %v961 = vpop.permute.xlu0 %960
        %962 = vrot.lane.b32.xlu0 %v601, 80
        %v963 = vpop.permute.xlu0 %962
        %v964 = vsel %vm615, %v961, 0
        %v966 = vsel %vm615, %v963, 0
        %968 = vmatprep.subr.mxu0 0.0
        %969 = vmatpush1.xpose.msra.mxu0 0.0
        %970 = vmatprep.subr.mxu0 0.0
        %971 = vmatpush1.xpose.msra.mxu0 0.0
        %972 = vmatprep.subr.mxu0 0.0
        %973 = vmatpush1.xpose.msra.mxu0 0.0
        %974 = vmatprep.subr.mxu0 0.0
        %975 = vmatpush1.xpose.msra.mxu0 0.0
        %976 = vmatprep.subr.mxu0 0.0
        %977 = vmatpush1.xpose.msra.mxu0 0.0
        %978 = vmatprep.subr.mxu0 0.0
        %979 = vmatpush1.xpose.msra.mxu0 0.0
        %980 = vmatprep.subr.mxu0 0.0
        %981 = vmatpush1.xpose.msra.mxu0 0.0
        %982 = vmatprep.subr.mxu0 0.0
        %983 = vmatpush1.xpose.msra.mxu0 0.0
        %984 = vmatprep.subr.mxu0 0.0
        %985 = vmatpush1.xpose.msra.mxu0 0.0
        %986 = vmatprep.subr.mxu0 0.0
        %987 = vmatpush1.xpose.msra.mxu0 0.0
        %988 = vmatprep.subr.mxu0 0.0
        %989 = vmatpush1.xpose.msra.mxu0 0.0
        %990 = vmatprep.subr.mxu0 0.0
        %991 = vmatpush1.xpose.msra.mxu0 0.0
        %992 = vmatprep.subr.mxu0 0.0
        %993 = vmatpush1.xpose.msra.mxu0 0.0
        %994 = vmatprep.subr.mxu0 0.0
        %995 = vmatpush1.xpose.msra.mxu0 0.0
        %996 = vmatprep.subr.mxu0 0.0
        %997 = vmatpush1.xpose.msra.mxu0 0.0
        %998 = vmatprep.subr.mxu0 0.0
        %999 = vmatpush1.xpose.msra.mxu0 %v966
        %1000 = vmatprep.subr.mxu0 0.0
        %1001 = vmatpush2.xpose.msra.mxu0 0.0
        %1002 = vmatprep.subr.mxu0 0.0
        %1003 = vmatpush2.xpose.msra.mxu0 0.0
        %1004 = vmatprep.subr.mxu0 0.0
        %1005 = vmatpush2.xpose.msra.mxu0 0.0
        %1006 = vmatprep.subr.mxu0 0.0
        %1007 = vmatpush2.xpose.msra.mxu0 0.0
        %1008 = vmatprep.subr.mxu0 0.0
        %1009 = vmatpush2.xpose.msra.mxu0 0.0
        %1010 = vmatprep.subr.mxu0 0.0
        %1011 = vmatpush2.xpose.msra.mxu0 0.0
        %1012 = vmatprep.subr.mxu0 0.0
        %1013 = vmatpush2.xpose.msra.mxu0 0.0
        %1014 = vmatprep.subr.mxu0 0.0
        %1015 = vmatpush2.xpose.msra.mxu0 0.0
        %1016 = vmatprep.subr.mxu0 0.0
        %1017 = vmatpush2.xpose.msra.mxu0 0.0
        %1018 = vmatprep.subr.mxu0 0.0
        %1019 = vmatpush2.xpose.msra.mxu0 0.0
        %1020 = vmatprep.subr.mxu0 0.0
        %1021 = vmatpush2.xpose.msra.mxu0 0.0
        %1022 = vmatprep.subr.mxu0 0.0
        %1023 = vmatpush2.xpose.msra.mxu0 0.0
        %1024 = vmatprep.subr.mxu0 0.0
        %1025 = vmatpush2.xpose.msra.mxu0 0.0
        %1026 = vmatprep.subr.mxu0 0.0
        %1027 = vmatpush2.xpose.msra.mxu0 0.0
        %1028 = vmatprep.subr.mxu0 0.0
        %1029 = vmatpush2.xpose.msra.mxu0 0.0
        %1030 = vmatprep.subr.mxu0 0.0
        %1031 = vmatpush2.xpose.msra.mxu0 0.0
        %1032 = vmatprep.mubr.f32.mxu0 0.0
        %1033 = vmatmul.mubr.f32.gmra.mxu0 %v964
        %v1034 = vpop.f32.mrf.mxu0
        %v1035 = vadd.f32 0.0, %v1034
        %v1036 = vpop.f32.mrf.mxu0
        %1037 = vdwg.mxu0
        %v1038 = vsel %vm697, %v1035, -1e+09
        %v1039 = vsel %vm615, %v1038, -inf
        %1040 = vmax.xlane.f32.xlu0 %v1039
        %v1041 = vpop.xlane.xlu0 %1040
        %v1042 = vsub.f32 %v1038, %v1041
        %v1043 = vmul.f32 %v1042, 1.442695
        %v1044 = vpow.pop %v1043
        %v1045 = vsel %vm615, %v1044, 0.0
        %1046 = vadd.xlane.f32.xlu0 %v1045
        %v1047 = vpop.xlane.xlu0 %1046
        %v1048 = vrcp.pop %v1047
        %v1049 = vmul.f32 %v1044, %v1048
        %1050 = vrot.lane.b32.xlu0 %v610, 48
        %v1051 = vpop.permute.xlu0 %1050
        %v1054 = vsel %vm615, %v1049, 0
        %1056 = vmatprep.subr.mxu0 0.0
        %1057 = vmatpush1.msra.mxu0 0.0
        %1058 = vmatprep.subr.mxu0 0.0
        %1059 = vmatpush1.msra.mxu0 0.0
        %1060 = vmatprep.subr.mxu0 0.0
        %1061 = vmatpush1.msra.mxu0 0.0
        %1062 = vmatprep.subr.mxu0 0.0
        %1063 = vmatpush1.msra.mxu0 0.0
        %1064 = vmatprep.subr.mxu0 0.0
        %1065 = vmatpush1.msra.mxu0 0.0
        %1066 = vmatprep.subr.mxu0 0.0
        %1067 = vmatpush1.msra.mxu0 0.0
        %1068 = vmatprep.subr.mxu0 0.0
        %1069 = vmatpush1.msra.mxu0 0.0
        %1070 = vmatprep.subr.mxu0 0.0
        %1071 = vmatpush1.msra.mxu0 0.0
        %1072 = vmatprep.subr.mxu0 0.0
        %1073 = vmatpush1.msra.mxu0 0.0
        %1074 = vmatprep.subr.mxu0 0.0
        %1075 = vmatpush1.msra.mxu0 0.0
        %1076 = vmatprep.subr.mxu0 0.0
        %1077 = vmatpush1.msra.mxu0 0.0
        %1078 = vmatprep.subr.mxu0 0.0
        %1079 = vmatpush1.msra.mxu0 0.0
        %1080 = vmatprep.subr.mxu0 0.0
        %1081 = vmatpush1.msra.mxu0 0.0
        %1082 = vmatprep.subr.mxu0 0.0
        %1083 = vmatpush1.msra.mxu0 0.0
        %1084 = vmatprep.subr.mxu0 0.0
        %1085 = vmatpush1.msra.mxu0 0.0
        %1086 = vmatprep.subr.mxu0 0.0
        %1087 = vmatpush1.msra.mxu0 %v1051
        %1088 = vmatprep.subr.mxu0 0.0
        %1089 = vmatpush2.msra.mxu0 0.0
        %1090 = vmatprep.subr.mxu0 0.0
        %1091 = vmatpush2.msra.mxu0 0.0
        %1092 = vmatprep.subr.mxu0 0.0
        %1093 = vmatpush2.msra.mxu0 0.0
        %1094 = vmatprep.subr.mxu0 0.0
        %1095 = vmatpush2.msra.mxu0 0.0
        %1096 = vmatprep.subr.mxu0 0.0
        %1097 = vmatpush2.msra.mxu0 0.0
        %1098 = vmatprep.subr.mxu0 0.0
        %1099 = vmatpush2.msra.mxu0 0.0
        %1100 = vmatprep.subr.mxu0 0.0
        %1101 = vmatpush2.msra.mxu0 0.0
        %1102 = vmatprep.subr.mxu0 0.0
        %1103 = vmatpush2.msra.mxu0 0.0
        %1104 = vmatprep.subr.mxu0 0.0
        %1105 = vmatpush2.msra.mxu0 0.0
        %1106 = vmatprep.subr.mxu0 0.0
        %1107 = vmatpush2.msra.mxu0 0.0
        %1108 = vmatprep.subr.mxu0 0.0
        %1109 = vmatpush2.msra.mxu0 0.0
        %1110 = vmatprep.subr.mxu0 0.0
        %1111 = vmatpush2.msra.mxu0 0.0
        %1112 = vmatprep.subr.mxu0 0.0
        %1113 = vmatpush2.msra.mxu0 0.0
        %1114 = vmatprep.subr.mxu0 0.0
        %1115 = vmatpush2.msra.mxu0 0.0
        %1116 = vmatprep.subr.mxu0 0.0
        %1117 = vmatpush2.msra.mxu0 0.0
        %1118 = vmatprep.subr.mxu0 0.0
        %1119 = vmatpush2.msra.mxu0 0.0
        %1120 = vmatprep.mubr.f32.mxu0 0.0
        %1121 = vmatmul.mubr.f32.gmra.mxu0 %v1054
        %v1122 = vpop.f32.mrf.mxu0
        %v1123 = vadd.f32 0.0, %v1122
        %v1124 = vpop.f32.mrf.mxu0
        %1125 = vdwg.mxu0
        %1127 = vrot.lane.b32.xlu0 %v1123, 16
        %v1128 = vpop.permute.xlu0 %1127
        %vm1130 = vcmask 195712
        %1131 = vst.msk [vmem:[#allocation3] sm:$0xff] %vm1130, %v1128
        %1132 = vrot.lane.b32.xlu0 %v592, 104
        %v1133 = vpop.permute.xlu0 %1132
        %1134 = vrot.lane.b32.xlu0 %v601, 72
        %v1135 = vpop.permute.xlu0 %1134
        %v1136 = vsel %vm615, %v1133, 0
        %v1138 = vsel %vm615, %v1135, 0
        %1140 = vmatprep.subr.mxu0 0.0
        %1141 = vmatpush1.xpose.msra.mxu0 0.0
        %1142 = vmatprep.subr.mxu0 0.0
        %1143 = vmatpush1.xpose.msra.mxu0 0.0
        %1144 = vmatprep.subr.mxu0 0.0
        %1145 = vmatpush1.xpose.msra.mxu0 0.0
        %1146 = vmatprep.subr.mxu0 0.0
        %1147 = vmatpush1.xpose.msra.mxu0 0.0
        %1148 = vmatprep.subr.mxu0 0.0
        %1149 = vmatpush1.xpose.msra.mxu0 0.0
        %1150 = vmatprep.subr.mxu0 0.0
        %1151 = vmatpush1.xpose.msra.mxu0 0.0
        %1152 = vmatprep.subr.mxu0 0.0
        %1153 = vmatpush1.xpose.msra.mxu0 0.0
        %1154 = vmatprep.subr.mxu0 0.0
        %1155 = vmatpush1.xpose.msra.mxu0 0.0
        %1156 = vmatprep.subr.mxu0 0.0
        %1157 = vmatpush1.xpose.msra.mxu0 0.0
        %1158 = vmatprep.subr.mxu0 0.0
        %1159 = vmatpush1.xpose.msra.mxu0 0.0
        %1160 = vmatprep.subr.mxu0 0.0
        %1161 = vmatpush1.xpose.msra.mxu0 0.0
        %1162 = vmatprep.subr.mxu0 0.0
        %1163 = vmatpush1.xpose.msra.mxu0 0.0
        %1164 = vmatprep.subr.mxu0 0.0
        %1165 = vmatpush1.xpose.msra.mxu0 0.0
        %1166 = vmatprep.subr.mxu0 0.0
        %1167 = vmatpush1.xpose.msra.mxu0 0.0
        %1168 = vmatprep.subr.mxu0 0.0
        %1169 = vmatpush1.xpose.msra.mxu0 0.0
        %1170 = vmatprep.subr.mxu0 0.0
        %1171 = vmatpush1.xpose.msra.mxu0 %v1138
        %1172 = vmatprep.subr.mxu0 0.0
        %1173 = vmatpush2.xpose.msra.mxu0 0.0
        %1174 = vmatprep.subr.mxu0 0.0
        %1175 = vmatpush2.xpose.msra.mxu0 0.0
        %1176 = vmatprep.subr.mxu0 0.0
        %1177 = vmatpush2.xpose.msra.mxu0 0.0
        %1178 = vmatprep.subr.mxu0 0.0
        %1179 = vmatpush2.xpose.msra.mxu0 0.0
        %1180 = vmatprep.subr.mxu0 0.0
        %1181 = vmatpush2.xpose.msra.mxu0 0.0
        %1182 = vmatprep.subr.mxu0 0.0
        %1183 = vmatpush2.xpose.msra.mxu0 0.0
        %1184 = vmatprep.subr.mxu0 0.0
        %1185 = vmatpush2.xpose.msra.mxu0 0.0
        %1186 = vmatprep.subr.mxu0 0.0
        %1187 = vmatpush2.xpose.msra.mxu0 0.0
        %1188 = vmatprep.subr.mxu0 0.0
        %1189 = vmatpush2.xpose.msra.mxu0 0.0
        %1190 = vmatprep.subr.mxu0 0.0
        %1191 = vmatpush2.xpose.msra.mxu0 0.0
        %1192 = vmatprep.subr.mxu0 0.0
        %1193 = vmatpush2.xpose.msra.mxu0 0.0
        %1194 = vmatprep.subr.mxu0 0.0
        %1195 = vmatpush2.xpose.msra.mxu0 0.0
        %1196 = vmatprep.subr.mxu0 0.0
        %1197 = vmatpush2.xpose.msra.mxu0 0.0
        %1198 = vmatprep.subr.mxu0 0.0
        %1199 = vmatpush2.xpose.msra.mxu0 0.0
        %1200 = vmatprep.subr.mxu0 0.0
        %1201 = vmatpush2.xpose.msra.mxu0 0.0
        %1202 = vmatprep.subr.mxu0 0.0
        %1203 = vmatpush2.xpose.msra.mxu0 0.0
        %1204 = vmatprep.mubr.f32.mxu0 0.0
        %1205 = vmatmul.mubr.f32.gmra.mxu0 %v1136
        %v1206 = vpop.f32.mrf.mxu0
        %v1207 = vadd.f32 0.0, %v1206
        %v1208 = vpop.f32.mrf.mxu0
        %1209 = vdwg.mxu0
        %v1210 = vsel %vm697, %v1207, -1e+09
        %v1211 = vsel %vm615, %v1210, -inf
        %1212 = vmax.xlane.f32.xlu0 %v1211
        %v1213 = vpop.xlane.xlu0 %1212
        %v1214 = vsub.f32 %v1210, %v1213
        %v1215 = vmul.f32 %v1214, 1.442695
        %v1216 = vpow.pop %v1215
        %v1217 = vsel %vm615, %v1216, 0.0
        %1218 = vadd.xlane.f32.xlu0 %v1217
        %v1219 = vpop.xlane.xlu0 %1218
        %v1220 = vrcp.pop %v1219
        %v1221 = vmul.f32 %v1216, %v1220
        %1222 = vrot.lane.b32.xlu0 %v610, 40
        %v1223 = vpop.permute.xlu0 %1222
        %v1226 = vsel %vm615, %v1221, 0
        %1228 = vmatprep.subr.mxu0 0.0
        %1229 = vmatpush1.msra.mxu0 0.0
        %1230 = vmatprep.subr.mxu0 0.0
        %1231 = vmatpush1.msra.mxu0 0.0
        %1232 = vmatprep.subr.mxu0 0.0
        %1233 = vmatpush1.msra.mxu0 0.0
        %1234 = vmatprep.subr.mxu0 0.0
        %1235 = vmatpush1.msra.mxu0 0.0
        %1236 = vmatprep.subr.mxu0 0.0
        %1237 = vmatpush1.msra.mxu0 0.0
        %1238 = vmatprep.subr.mxu0 0.0
        %1239 = vmatpush1.msra.mxu0 0.0
        %1240 = vmatprep.subr.mxu0 0.0
        %1241 = vmatpush1.msra.mxu0 0.0
        %1242 = vmatprep.subr.mxu0 0.0
        %1243 = vmatpush1.msra.mxu0 0.0
        %1244 = vmatprep.subr.mxu0 0.0
        %1245 = vmatpush1.msra.mxu0 0.0
        %1246 = vmatprep.subr.mxu0 0.0
        %1247 = vmatpush1.msra.mxu0 0.0
        %1248 = vmatprep.subr.mxu0 0.0
        %1249 = vmatpush1.msra.mxu0 0.0
        %1250 = vmatprep.subr.mxu0 0.0
        %1251 = vmatpush1.msra.mxu0 0.0
        %1252 = vmatprep.subr.mxu0 0.0
        %1253 = vmatpush1.msra.mxu0 0.0
        %1254 = vmatprep.subr.mxu0 0.0
        %1255 = vmatpush1.msra.mxu0 0.0
        %1256 = vmatprep.subr.mxu0 0.0
        %1257 = vmatpush1.msra.mxu0 0.0
        %1258 = vmatprep.subr.mxu0 0.0
        %1259 = vmatpush1.msra.mxu0 %v1223
        %1260 = vmatprep.subr.mxu0 0.0
        %1261 = vmatpush2.msra.mxu0 0.0
        %1262 = vmatprep.subr.mxu0 0.0
        %1263 = vmatpush2.msra.mxu0 0.0
        %1264 = vmatprep.subr.mxu0 0.0
        %1265 = vmatpush2.msra.mxu0 0.0
        %1266 = vmatprep.subr.mxu0 0.0
        %1267 = vmatpush2.msra.mxu0 0.0
        %1268 = vmatprep.subr.mxu0 0.0
        %1269 = vmatpush2.msra.mxu0 0.0
        %1270 = vmatprep.subr.mxu0 0.0
        %1271 = vmatpush2.msra.mxu0 0.0
        %1272 = vmatprep.subr.mxu0 0.0
        %1273 = vmatpush2.msra.mxu0 0.0
        %1274 = vmatprep.subr.mxu0 0.0
        %1275 = vmatpush2.msra.mxu0 0.0
        %1276 = vmatprep.subr.mxu0 0.0
        %1277 = vmatpush2.msra.mxu0 0.0
        %1278 = vmatprep.subr.mxu0 0.0
        %1279 = vmatpush2.msra.mxu0 0.0
        %1280 = vmatprep.subr.mxu0 0.0
        %1281 = vmatpush2.msra.mxu0 0.0
        %1282 = vmatprep.subr.mxu0 0.0
        %1283 = vmatpush2.msra.mxu0 0.0
        %1284 = vmatprep.subr.mxu0 0.0
        %1285 = vmatpush2.msra.mxu0 0.0
        %1286 = vmatprep.subr.mxu0 0.0
        %1287 = vmatpush2.msra.mxu0 0.0
        %1288 = vmatprep.subr.mxu0 0.0
        %1289 = vmatpush2.msra.mxu0 0.0
        %1290 = vmatprep.subr.mxu0 0.0
        %1291 = vmatpush2.msra.mxu0 0.0
        %1292 = vmatprep.mubr.f32.mxu0 0.0
        %1293 = vmatmul.mubr.f32.gmra.mxu0 %v1226
        %v1294 = vpop.f32.mrf.mxu0
        %v1295 = vadd.f32 0.0, %v1294
        %v1296 = vpop.f32.mrf.mxu0
        %1297 = vdwg.mxu0
        %1299 = vrot.lane.b32.xlu0 %v1295, 24
        %v1300 = vpop.permute.xlu0 %1299
        %vm1302 = vcmask 261312
        %1303 = vst.msk [vmem:[#allocation3] sm:$0xff] %vm1302, %v1300
        %v1304 = vld [vmem:[#allocation3] sm:$0xff]
        %v1305 = vld [vmem:[%s449] sm:$0xff]
        %v1306 = vld [vmem:[%s449 + $0x8] sm:$0xff]
        %v1307 = vld [vmem:[%s449 + $0x10] sm:$0xff]
        %v1308 = vld [vmem:[%s449 + $0x18] sm:$0xff]
        %v1310 = vsel %vm478, %v1304, 0
        %1312 = vmatprep.subr.mxu0 0.0
        %1313 = vmatpush1.msra.mxu0 0.0
        %1314 = vmatprep.subr.mxu0 0.0
        %1315 = vmatpush1.msra.mxu0 0.0
        %1316 = vmatprep.subr.mxu0 0.0
        %1317 = vmatpush1.msra.mxu0 0.0
        %1318 = vmatprep.subr.mxu0 0.0
        %1319 = vmatpush1.msra.mxu0 0.0
        %1320 = vmatprep.subr.mxu0 0.0
        %1321 = vmatpush1.msra.mxu0 0.0
        %1322 = vmatprep.subr.mxu0 0.0
        %1323 = vmatpush1.msra.mxu0 0.0
        %1324 = vmatprep.subr.mxu0 0.0
        %1325 = vmatpush1.msra.mxu0 0.0
        %1326 = vmatprep.subr.mxu0 0.0
        %1327 = vmatpush1.msra.mxu0 0.0
        %1328 = vmatprep.subr.mxu0 0.0
        %1329 = vmatpush1.msra.mxu0 0.0
        %1330 = vmatprep.subr.mxu0 0.0
        %1331 = vmatpush1.msra.mxu0 0.0
        %1332 = vmatprep.subr.mxu0 0.0
        %1333 = vmatpush1.msra.mxu0 0.0
        %1334 = vmatprep.subr.mxu0 0.0
        %1335 = vmatpush1.msra.mxu0 0.0
        %1336 = vmatprep.subr.mxu0 0.0
        %1337 = vmatpush1.msra.mxu0 %v1308
        %1338 = vmatprep.subr.mxu0 0.0
        %1339 = vmatpush1.msra.mxu0 %v1307
        %1340 = vmatprep.subr.mxu0 0.0
        %1341 = vmatpush1.msra.mxu0 %v1306
        %1342 = vmatprep.subr.mxu0 0.0
        %1343 = vmatpush1.msra.mxu0 %v1305
        %1344 = vmatprep.subr.mxu0 0.0
        %1345 = vmatpush2.msra.mxu0 0.0
        %1346 = vmatprep.subr.mxu0 0.0
        %1347 = vmatpush2.msra.mxu0 0.0
        %1348 = vmatprep.subr.mxu0 0.0
        %1349 = vmatpush2.msra.mxu0 0.0
        %1350 = vmatprep.subr.mxu0 0.0
        %1351 = vmatpush2.msra.mxu0 0.0
        %1352 = vmatprep.subr.mxu0 0.0
        %1353 = vmatpush2.msra.mxu0 0.0
        %1354 = vmatprep.subr.mxu0 0.0
        %1355 = vmatpush2.msra.mxu0 0.0
        %1356 = vmatprep.subr.mxu0 0.0
        %1357 = vmatpush2.msra.mxu0 0.0
        %1358 = vmatprep.subr.mxu0 0.0
        %1359 = vmatpush2.msra.mxu0 0.0
        %1360 = vmatprep.subr.mxu0 0.0
        %1361 = vmatpush2.msra.mxu0 0.0
        %1362 = vmatprep.subr.mxu0 0.0
        %1363 = vmatpush2.msra.mxu0 0.0
        %1364 = vmatprep.subr.mxu0 0.0
        %1365 = vmatpush2.msra.mxu0 0.0
        %1366 = vmatprep.subr.mxu0 0.0
        %1367 = vmatpush2.msra.mxu0 0.0
        %1368 = vmatprep.subr.mxu0 0.0
        %1369 = vmatpush2.msra.mxu0 0.0
        %1370 = vmatprep.subr.mxu0 0.0
        %1371 = vmatpush2.msra.mxu0 0.0
        %1372 = vmatprep.subr.mxu0 0.0
        %1373 = vmatpush2.msra.mxu0 0.0
        %1374 = vmatprep.subr.mxu0 0.0
        %1375 = vmatpush2.msra.mxu0 0.0
        %1376 = vmatprep.mubr.f32.mxu0 0.0
        %1377 = vmatmul.mubr.f32.gmra.mxu0 %v1310
        %v1378 = vpop.f32.mrf.mxu0
        %v1379 = vadd.f32 0.0, %v1378
        %v1380 = vpop.f32.mrf.mxu0
        %1381 = vdwg.mxu0
        %v1382 = vadd.f32 %v475, %v1379
        %v1383 = vlaneseq
        %v1384 = vshrl.u32 %v1383, 7
        %v1385 = vsub.s32 5, %v1384
        %v1386 = vrot.slane %v476, %v1385
        %v1387 = vadd.f32 %v1382, %v1386
        %v1388 = vsel %vm478, %v1387, 0.0
        %1389 = vadd.xlane.f32.xlu0 %v1388
        %v1390 = vpop.xlane.xlu0 %1389
        %v1391 = vmul.f32 %v1390, %v482
        %v1392 = vsub.f32 %v1387, %v1391
        %v1393 = vmul.f32 %v1392, %v1392
        %v1394 = vsel %vm478, %v1393, 0.0
        %1395 = vadd.xlane.f32.xlu0 %v1394
        %v1396 = vpop.xlane.xlu0 %1395
        %v1397 = vmul.f32 %v1396, 0.032258064
        %v1398 = vrsqrt.pop %v1397
        %v1399 = vmul.f32 %v1397, %v1398
        %vm1400 = vcmp.eq.f32.partialorder %v1397, inf
        %v1401 = vsel %vm1400, %v1397, %v1399
        %vm1402 = vcmp.eq.f32.partialorder %v1397, 0.0
        %v1403 = vand.u32 %v1397, 2147483648
        %v1404 = vsel %vm1402, %v1403, %v1401
        %v1405 = vadd.f32 %v1404, 1e-06
        %v1406 = vrcp.pop %v1405
        %v1407 = vlaneseq
        %v1408 = vshrl.u32 %v1407, 7
        %v1409 = vsub.s32 6, %v1408
        %v1410 = vrot.slane %v476, %v1409
        %v1411 = vmul.f32 %v1410, %v1392
        %v1412 = vmul.f32 %v1411, %v1406
        %v1413 = vlaneseq
        %v1414 = vshrl.u32 %v1413, 7
        %v1415 = vsub.s32 7, %v1414
        %v1416 = vrot.slane %v476, %v1415
        %v1417 = vadd.f32 %v1412, %v1416
        %v1418 = vld [vmem:[%s454] sm:$0xff]
        %v1419 = vld [vmem:[%s454 + $0x8] sm:$0xff]
        %v1420 = vld [vmem:[%s454 + $0x10] sm:$0xff]
        %v1421 = vld [vmem:[%s454 + $0x18] sm:$0xff]
        %v1422 = vld [vmem:[%s457] sm:$0x1]
        %v1424 = vlaneseq
        %v1425 = vshrl.u32 %v1424, 7
        %v1426 = vsub.s32 0, %v1425
        %v1427 = vrot.slane %v1422, %v1426
        %v1430 = vsel %vm478, %v1417, 0
        %1432 = vmatprep.subr.mxu0 0.0
        %1433 = vmatpush1.msra.mxu0 0.0
        %1434 = vmatprep.subr.mxu0 0.0
        %1435 = vmatpush1.msra.mxu0 0.0
        %1436 = vmatprep.subr.mxu0 0.0
        %1437 = vmatpush1.msra.mxu0 0.0
        %1438 = vmatprep.subr.mxu0 0.0
        %1439 = vmatpush1.msra.mxu0 0.0
        %1440 = vmatprep.subr.mxu0 0.0
        %1441 = vmatpush1.msra.mxu0 0.0
        %1442 = vmatprep.subr.mxu0 0.0
        %1443 = vmatpush1.msra.mxu0 0.0
        %1444 = vmatprep.subr.mxu0 0.0
        %1445 = vmatpush1.msra.mxu0 0.0
        %1446 = vmatprep.subr.mxu0 0.0
        %1447 = vmatpush1.msra.mxu0 0.0
        %1448 = vmatprep.subr.mxu0 0.0
        %1449 = vmatpush1.msra.mxu0 0.0
        %1450 = vmatprep.subr.mxu0 0.0
        %1451 = vmatpush1.msra.mxu0 0.0
        %1452 = vmatprep.subr.mxu0 0.0
        %1453 = vmatpush1.msra.mxu0 0.0
        %1454 = vmatprep.subr.mxu0 0.0
        %1455 = vmatpush1.msra.mxu0 0.0
        %1456 = vmatprep.subr.mxu0 0.0
        %1457 = vmatpush1.msra.mxu0 %v1421
        %1458 = vmatprep.subr.mxu0 0.0
        %1459 = vmatpush1.msra.mxu0 %v1420
        %1460 = vmatprep.subr.mxu0 0.0
        %1461 = vmatpush1.msra.mxu0 %v1419
        %1462 = vmatprep.subr.mxu0 0.0
        %1463 = vmatpush1.msra.mxu0 %v1418
        %1464 = vmatprep.subr.mxu0 0.0
        %1465 = vmatpush2.msra.mxu0 0.0
        %1466 = vmatprep.subr.mxu0 0.0
        %1467 = vmatpush2.msra.mxu0 0.0
        %1468 = vmatprep.subr.mxu0 0.0
        %1469 = vmatpush2.msra.mxu0 0.0
        %1470 = vmatprep.subr.mxu0 0.0
        %1471 = vmatpush2.msra.mxu0 0.0
        %1472 = vmatprep.subr.mxu0 0.0
        %1473 = vmatpush2.msra.mxu0 0.0
        %1474 = vmatprep.subr.mxu0 0.0
        %1475 = vmatpush2.msra.mxu0 0.0
        %1476 = vmatprep.subr.mxu0 0.0
        %1477 = vmatpush2.msra.mxu0 0.0
        %1478 = vmatprep.subr.mxu0 0.0
        %1479 = vmatpush2.msra.mxu0 0.0
        %1480 = vmatprep.subr.mxu0 0.0
        %1481 = vmatpush2.msra.mxu0 0.0
        %1482 = vmatprep.subr.mxu0 0.0
        %1483 = vmatpush2.msra.mxu0 0.0
        %1484 = vmatprep.subr.mxu0 0.0
        %1485 = vmatpush2.msra.mxu0 0.0
        %1486 = vmatprep.subr.mxu0 0.0
        %1487 = vmatpush2.msra.mxu0 0.0
        %1488 = vmatprep.subr.mxu0 0.0
        %1489 = vmatpush2.msra.mxu0 0.0
        %1490 = vmatprep.subr.mxu0 0.0
        %1491 = vmatpush2.msra.mxu0 0.0
        %1492 = vmatprep.subr.mxu0 0.0
        %1493 = vmatpush2.msra.mxu0 0.0
        %1494 = vmatprep.subr.mxu0 0.0
        %1495 = vmatpush2.msra.mxu0 0.0
        %1496 = vmatprep.mubr.f32.mxu0 0.0
        %1497 = vmatmul.mubr.f32.gmra.mxu0 %v1430
        %v1498 = vpop.f32.mrf.mxu0
        %v1499 = vadd.f32 %v1427, %v1498
        %v1500 = vpop.f32.mrf.mxu0
        %1501 = vdwg.mxu0
        %v1502 = vmax.f32 %v1499, 0.0
        %v1503 = vld [vmem:[%s462] sm:$0xff]
        %v1504 = vld [vmem:[%s462 + $0x8] sm:$0xff]
        %v1505 = vld [vmem:[%s462 + $0x10] sm:$0xff]
        %v1506 = vld [vmem:[%s462 + $0x18] sm:$0xff]
        %v1507 = vld [vmem:[%s462 + $0x20] sm:$0xff]
        %v1508 = vld [vmem:[%s462 + $0x28] sm:$0xff]
        %v1509 = vld [vmem:[%s462 + $0x30] sm:$0xff]
        %v1510 = vld [vmem:[%s462 + $0x38] sm:$0xff]
        %vm1511 = vcmask 523264
        %v1513 = vsel %vm1511, %v1502, 0
        %1515 = vmatprep.subr.mxu0 0.0
        %1516 = vmatpush1.msra.mxu0 0.0
        %1517 = vmatprep.subr.mxu0 0.0
        %1518 = vmatpush1.msra.mxu0 0.0
        %1519 = vmatprep.subr.mxu0 0.0
        %1520 = vmatpush1.msra.mxu0 0.0
        %1521 = vmatprep.subr.mxu0 0.0
        %1522 = vmatpush1.msra.mxu0 0.0
        %1523 = vmatprep.subr.mxu0 0.0
        %1524 = vmatpush1.msra.mxu0 0.0
        %1525 = vmatprep.subr.mxu0 0.0
        %1526 = vmatpush1.msra.mxu0 0.0
        %1527 = vmatprep.subr.mxu0 0.0
        %1528 = vmatpush1.msra.mxu0 0.0
        %1529 = vmatprep.subr.mxu0 0.0
        %1530 = vmatpush1.msra.mxu0 0.0
        %1531 = vmatprep.subr.mxu0 0.0
        %1532 = vmatpush1.msra.mxu0 %v1510
        %1533 = vmatprep.subr.mxu0 0.0
        %1534 = vmatpush1.msra.mxu0 %v1509
        %1535 = vmatprep.subr.mxu0 0.0
        %1536 = vmatpush1.msra.mxu0 %v1508
        %1537 = vmatprep.subr.mxu0 0.0
        %1538 = vmatpush1.msra.mxu0 %v1507
        %1539 = vmatprep.subr.mxu0 0.0
        %1540 = vmatpush1.msra.mxu0 %v1506
        %1541 = vmatprep.subr.mxu0 0.0
        %1542 = vmatpush1.msra.mxu0 %v1505
        %1543 = vmatprep.subr.mxu0 0.0
        %1544 = vmatpush1.msra.mxu0 %v1504
        %1545 = vmatprep.subr.mxu0 0.0
        %1546 = vmatpush1.msra.mxu0 %v1503
        %1547 = vmatprep.subr.mxu0 0.0
        %1548 = vmatpush2.msra.mxu0 0.0
        %1549 = vmatprep.subr.mxu0 0.0
        %1550 = vmatpush2.msra.mxu0 0.0
        %1551 = vmatprep.subr.mxu0 0.0
        %1552 = vmatpush2.msra.mxu0 0.0
        %1553 = vmatprep.subr.mxu0 0.0
        %1554 = vmatpush2.msra.mxu0 0.0
        %1555 = vmatprep.subr.mxu0 0.0
        %1556 = vmatpush2.msra.mxu0 0.0
        %1557 = vmatprep.subr.mxu0 0.0
        %1558 = vmatpush2.msra.mxu0 0.0
        %1559 = vmatprep.subr.mxu0 0.0
        %1560 = vmatpush2.msra.mxu0 0.0
        %1561 = vmatprep.subr.mxu0 0.0
        %1562 = vmatpush2.msra.mxu0 0.0
        %1563 = vmatprep.subr.mxu0 0.0
        %1564 = vmatpush2.msra.mxu0 0.0
        %1565 = vmatprep.subr.mxu0 0.0
        %1566 = vmatpush2.msra.mxu0 0.0
        %1567 = vmatprep.subr.mxu0 0.0
        %1568 = vmatpush2.msra.mxu0 0.0
        %1569 = vmatprep.subr.mxu0 0.0
        %1570 = vmatpush2.msra.mxu0 0.0
        %1571 = vmatprep.subr.mxu0 0.0
        %1572 = vmatpush2.msra.mxu0 0.0
        %1573 = vmatprep.subr.mxu0 0.0
        %1574 = vmatpush2.msra.mxu0 0.0
        %1575 = vmatprep.subr.mxu0 0.0
        %1576 = vmatpush2.msra.mxu0 0.0
        %1577 = vmatprep.subr.mxu0 0.0
        %1578 = vmatpush2.msra.mxu0 0.0
        %1579 = vmatprep.mubr.f32.mxu0 0.0
        %1580 = vmatmul.mubr.f32.gmra.mxu0 %v1513
        %v1581 = vpop.f32.mrf.mxu0
        %v1582 = vadd.f32 0.0, %v1581
        %v1583 = vpop.f32.mrf.mxu0
        %1584 = vdwg.mxu0
        %v1585 = vadd.f32 %v1387, %v1582
        %v1586 = vlaneseq
        %v1587 = vshrl.u32 %v1586, 7
        %v1588 = vsub.s32 0, %v1587
        %v1589 = vrot.slane %v477, %v1588
        %v1590 = vadd.f32 %v1585, %v1589
        %1591 = vst.msk [vmem:[#allocation2] sm:$0xff] %vm478, %v1590
        %p1592 = scmp.eq.s32.totalorder %s28, 1
        // Predicated region
        $region61: #{tpu_custom_call.1} parent=55 // pred_check
          %p1593 = pneg %p1592
        $region62: #{tpu_custom_call.1} parent=55 // pred_check_branch
          %1595 = sbr.rel (%p1593) target = $region64
        $region63: #{tpu_custom_call.1} parent=55 // pred_region
          %v1596 = vld [vmem:[%s8] sm:$0x3]
          %v1597 = vsel %vm478, %v1590, 0.0
          %1598 = vadd.xlane.f32.xlu0 %v1597
          %v1599 = vpop.xlane.xlu0 %1598
          %v1600 = vmul.f32 %v1599, %v482
          %v1601 = vsub.f32 %v1590, %v1600
          %v1602 = vmul.f32 %v1601, %v1601
          %v1603 = vsel %vm478, %v1602, 0.0
          %1604 = vadd.xlane.f32.xlu0 %v1603
          %v1605 = vpop.xlane.xlu0 %1604
          %v1606 = vmul.f32 %v1605, 0.032258064
          %v1607 = vrsqrt.pop %v1606
          %v1608 = vmul.f32 %v1606, %v1607
          %vm1609 = vcmp.eq.f32.partialorder %v1606, inf
          %v1610 = vsel %vm1609, %v1606, %v1608
          %vm1611 = vcmp.eq.f32.partialorder %v1606, 0.0
          %v1612 = vand.u32 %v1606, 2147483648
          %v1613 = vsel %vm1611, %v1612, %v1610
          %v1614 = vadd.f32 %v1613, 1e-06
          %v1615 = vrcp.pop %v1614
          %v1616 = vlaneseq
          %v1617 = vshrl.u32 %v1616, 7
          %v1618 = vsub.s32 0, %v1617
          %v1619 = vrot.slane %v1596, %v1618
          %v1620 = vmul.f32 %v1619, %v1601
          %v1621 = vmul.f32 %v1620, %v1615
          %v1622 = vlaneseq
          %v1623 = vshrl.u32 %v1622, 7
          %v1624 = vsub.s32 1, %v1623
          %v1625 = vrot.slane %v1596, %v1624
          %v1626 = vadd.f32 %v1621, %v1625
          %1627 = vst.msk [vmem:[%s432] sm:$0xff] %vm478, %v1626
        $region64: #{tpu_custom_call.1} parent=55 // pred_fallthru
          _
        %s1628 = sand.u32 %s272, 1
        %s1629 = scalar_lea.sflag [#allocation5], %s1628
        %s1630 = sand.u32 %s272, 1
        %s1631 = smul.addr %s1630, 8
        %s1632 = scalar_lea.vmem [#allocation4], %s1631
        // Predicated region
        $region65: #{tpu_custom_call.1} parent=55 // pred_check
          %p1633 = pneg %p282
        $region66: #{tpu_custom_call.1} parent=55 // pred_check_branch
          %1635 = sbr.rel (%p1633) target = $region68
        $region67: #{tpu_custom_call.1} parent=55 // pred_region
          %s1637 = ssub.s32 128, 128
          %1638 = vsyncadd %s1629, %s1637
          %s1639 = smul.addr %s27, 128
          %s1640 = scalar_lea.hbm %s9, %s1639
          %s1642 = sshll.u32 %s1632, 4
          %s1643 = int_to_ptr.vmem [resolvable:$true] %s1642
          %1645 = dma.vmem_to_hbm [thread:$0]  %s1643, 128, %s1640, %s1629
        $region68: #{tpu_custom_call.1} parent=55 // pred_fallthru
          _
      $region56: #{tpu_custom_call.1} parent=5 // pred_fallthru
        _
      %p1646 = scmp.le.s32.totalorder 2, %s18
      // Predicated region
      $region69: #{tpu_custom_call.1} parent=5 // pred_check
        %p1647 = pneg %p1646
      $region70: #{tpu_custom_call.1} parent=5 // pred_check_branch
        %1649 = sbr.rel (%p1647) target = $region72
      $region71: #{tpu_custom_call.1} parent=5 // pred_region
        %s1650 = ssub.s32 %s18, 2
        // Predicated region
        $region73: #{tpu_custom_call.1} parent=71 // pred_check
          %p1651 = pneg %p288
        $region74: #{tpu_custom_call.1} parent=71 // pred_check_branch
          %1653 = sbr.rel (%p1651) target = $region76
        $region75: #{tpu_custom_call.1} parent=71 // pred_region
          %s1654 = sand.u32 %s273, 1
          %s1655 = scalar_lea.sflag [#allocation5], %s1654
          %s1656 = sand.u32 %s273, 1
          %s1657 = smul.addr %s1656, 8
          %s1658 = scalar_lea.vmem [#allocation4], %s1657
          %1659 = dma.done %s1655, 128
        $region76: #{tpu_custom_call.1} parent=71 // pred_fallthru
          _
      $region72: #{tpu_custom_call.1} parent=5 // pred_fallthru
        _
    $region6: #{tpu_custom_call.1} parent=1 // loop_footer
      %s22 = sadd.s32 1, %s18
    $region7: #{tpu_custom_call.1} parent=1 // loop_footer_branch
      %17 = sbr.rel target = $region3
    $region8: #{tpu_custom_call.1} parent=1 // loop_exit
      _
    %1660 = vsyncpa [#allocation5], 1
    %s1661 = scalar_lea.sflag [#allocation5], 1
    %1662 = vsyncpa %s1661, 1

</llo_original>
